<compile_context>
chip_gen: v6e
topology: v6e:2x2x1
jax: 0.10.0
libtpu: 0.0.40
codegen_flags: <defaults>
</compile_context>

<pallas_src>
import functools
import math

import jax
import jax.numpy as jnp
from jax import lax
from jax.experimental import pallas as pl
from jax.experimental.pallas import tpu as pltpu


def _layernorm(h, gamma, beta, eps=1e-5):
    mean = jnp.mean(h, axis=-1, keepdims=True)
    var = jnp.mean((h - mean) ** 2, axis=-1, keepdims=True)
    return (h - mean) * lax.rsqrt(var + eps) * gamma + beta


def block_kernel(x_ref,
                 ln1_g_ref, ln1_b_ref,
                 wqkv_ref, wproj_ref, bproj_ref,
                 ln2_g_ref, ln2_b_ref,
                 w1_ref, b1_ref, w2_ref, b2_ref,
                 out_ref, attn_ref,
                 *, n_head, head_size, block_b, seq_len, causal, approx_recip):
    T, hs = seq_len, head_size
    xf = x_ref[...]                              # (R, C) f32, R = block_b * T
    R, C = xf.shape
    mm_dtype = wqkv_ref.dtype                    # f32 or bf16 matmul operands

    # --- ln1 (f32, VPU) + fused QKV projection: one (R,C)x(C,3C) MXU matmul ----
    xln = _layernorm(xf, ln1_g_ref[0], ln1_b_ref[0]).astype(mm_dtype)
    qkv = jnp.dot(xln, wqkv_ref[...], preferred_element_type=jnp.float32)  # (R,3C)
    # NOTE: the 1/sqrt(C) attention scale is pre-folded into the q columns.
    q = qkv[:, :C]
    k = qkv[:, C:2 * C]
    v = qkv[:, 2 * C:]

    # --- attention: ONE batched contraction over G = block_b * n_head ---------
    # (R,C) -> (R,H,hs) -> (H,R,hs) -> (G,T,hs) with g = h*block_b + b: a single
    # whole-slab relayout per tensor (no per-row loop, no sublane concatenate).
    G = n_head * block_b

    def to_heads(a):
        return jnp.swapaxes(a.reshape(R, n_head, hs), 0, 1).reshape(G, T, hs)

    qb, kb, vb = to_heads(q), to_heads(k), to_heads(v)

    s = jnp.einsum('gqd,gkd->gqk', qb, kb,
                   preferred_element_type=jnp.float32)        # (G, T, T)
    if causal:
        row = lax.broadcasted_iota(jnp.int32, (T, T), 0)
        col = lax.broadcasted_iota(jnp.int32, (T, T), 1)
        # Finite mask value: same result as -inf for causal masks, NaN-safe.
        s = jnp.where((col <= row)[None], s, -1e30)

    m = jnp.max(s, axis=-1, keepdims=True)
    e = jnp.exp(s - m)
    denom = jnp.sum(e, axis=-1, keepdims=True)
    if approx_recip:
        p = e * pl.reciprocal(denom, approx=True)   # EUP slot, overlaps VPU work
    else:
        p = e / denom                               # exact (accuracy-check path)

    # Head-0 attention weights for every batch row of this block: g in
    # [0, block_b) is a contiguous leading-dim slice, written once as one slab.
    attn_ref[...] = p[:block_b].astype(attn_ref.dtype)

    ctx = jnp.einsum('gqk,gkd->gqd', p, vb,
                     preferred_element_type=jnp.float32)      # (G, T, hs)
    sa = jnp.swapaxes(ctx.reshape(n_head, R, hs), 0, 1).reshape(R, C)

    # --- output projection + first residual -----------------------------------
    y = jnp.dot(sa.astype(mm_dtype), wproj_ref[...],
                preferred_element_type=jnp.float32) + bproj_ref[0]
    x1 = xf + y

    # --- ln2 + feed-forward + second residual ----------------------------------
    x2 = _layernorm(x1, ln2_g_ref[0], ln2_b_ref[0]).astype(mm_dtype)
    h = jnp.dot(x2, w1_ref[...], preferred_element_type=jnp.float32) + b1_ref[0]
    h = jnp.maximum(h, 0.0).astype(mm_dtype)      # ReLU in f32, cast for 2nd GEMM
    ff = jnp.dot(h, w2_ref[...], preferred_element_type=jnp.float32) + b2_ref[0]

    out_ref[...] = (x1 + ff).astype(out_ref.dtype)


# ----------------------------------------------------------------------------
# Wrapper-side helpers
# ----------------------------------------------------------------------------
def _probe_kernel(x_ref, o_ref):
    o_ref[...] = x_ref[...]


@functools.lru_cache(maxsize=None)
def _weight_pipeline_mode():
    """pl.Buffered(1) for constant-index weight BlockSpecs (halves resident weight
    VMEM vs. the default 2-deep pipeline) if the installed jax/Mosaic accepts it.
    Probed once with a tiny kernel; falls back to default buffering otherwise."""
    if not hasattr(pl, "Buffered"):
        return None
    try:
        spec = pl.BlockSpec((8, 128), lambda i: (0, 0), pipeline_mode=pl.Buffered(1))
        fn = pl.pallas_call(
            _probe_kernel,
            grid=(1,),
            in_specs=[spec],
            out_specs=pl.BlockSpec((8, 128), lambda i: (i, 0)),
            out_shape=jax.ShapeDtypeStruct((8, 128), jnp.float32),
        )
        jax.block_until_ready(fn(jnp.zeros((8, 128), jnp.float32)))
        return pl.Buffered(1)
    except Exception:
        return None


def _vmem_capacity_bytes():
    try:
        return int(pltpu.get_tpu_info().vmem_capacity_bytes)
    except Exception:
        return 64 << 20          # conservative default: v7x per-TensorCore VMEM


def _default_compute_dtype():
    # v5e runs f32 MXU operands at a small fraction of bf16 throughput.
    try:
        kind = jax.devices()[0].device_kind.lower()
    except Exception:
        return jnp.float32
    if "v5 lite" in kind or "v5e" in kind or "v5litepod" in kind:
        return jnp.bfloat16
    return jnp.float32


def _estimated_vmem_bytes(C, H, n_head, block_b, T, mm_itemsize, weight_buffers):
    R = block_b * T
    weights = (4 * C * C + 2 * C * H) * mm_itemsize * weight_buffers  # wqkv,wproj,w1,w2
    vectors = (6 * C + H) * 4                                         # ln params, biases
    act = 2 * (2 * R * C + block_b * T * T) * 4                       # pipelined in/out
    scratch = (3 * R * C + 3 * block_b * n_head * T * T + R * H + 4 * R * C) * 4
    return weights + vectors + act + scratch


def _pick_block_b(B, T, C, H, n_head, mm_itemsize, weight_buffers, target_rows=256):
    """Batch rows per grid step: fill the 256-wide MXU M dim when VMEM allows, and
    keep the parallel grid extent >= 2 when B allows so both v7x TensorCores stay
    busy (each core holds its own resident weight copy)."""
    budget = max(_vmem_capacity_bytes() - (8 << 20), 16 << 20)
    divs = [d for d in range(1, B + 1) if B % d == 0]
    ok = [d for d in divs
          if d * T <= target_rows
          and _estimated_vmem_bytes(C, H, n_head, d, T, mm_itemsize,
                                    weight_buffers) <= budget]
    if not ok:
        ok = [1]
    pref = [d for d in ok if B // d >= 2]
    return max(pref) if (B >= 2 and pref) else max(ok)


def transformer_block(x, params, *, n_head, causal=True, compute_dtype=None,
                      block_b=None, approx_recip=True):
    """x: (B, T, C) float32.  Returns (out (B,T,C), attn_head0 (B,T,T))."""
    B, T, C = x.shape
    head_size = C // n_head
    H = 4 * C

    (ln1_g, ln1_b, wq, wk, wv, wproj, bproj,
     ln2_g, ln2_b, w1, b1, w2, b2) = params

    if compute_dtype is None:
        compute_dtype = _default_compute_dtype()
    mm = jnp.dtype(compute_dtype)

    # Host-side (free) weight prep: fold the 1/sqrt(C) attention scale into the
    # query columns and fuse Wq/Wk/Wv into a single (C, 3C) matmul operand.
    wqkv = jnp.concatenate([wq * (C ** -0.5), wk, wv], axis=1).astype(mm)
    wproj_m = wproj.astype(mm)
    w1_m = w1.astype(mm)
    w2_m = w2.astype(mm)

    pipeline_mode = _weight_pipeline_mode()
    weight_buffers = 1 if pipeline_mode is not None else 2

    if block_b is None:
        block_b = _pick_block_b(B, T, C, H, n_head, mm.itemsize, weight_buffers)
    assert B % block_b == 0, "block_b must divide B"
    grid = (B // block_b,)
    R = block_b * T

    x2d = x.reshape(B * T, C)                    # flattened rows: lane axis = C

    def wspec(shape):
        nd = len(shape)
        imap = lambda i, _nd=nd: (0,) * _nd      # constant: weights stay resident
        if pipeline_mode is not None:
            return pl.BlockSpec(shape, imap, pipeline_mode=pipeline_mode)
        return pl.BlockSpec(shape, imap)

    in_specs = [
        pl.BlockSpec((R, C), lambda i: (i, 0)),          # activation rows (streamed)
        wspec((1, C)), wspec((1, C)),                    # ln1 gamma, beta
        wspec((C, 3 * C)),                               # fused Wqkv (q pre-scaled)
        wspec((C, C)), wspec((1, C)),                    # proj W, b
        wspec((1, C)), wspec((1, C)),                    # ln2 gamma, beta
        wspec((C, H)), wspec((1, H)),                    # ffwd W1, b1
        wspec((H, C)), wspec((1, C)),                    # ffwd W2, b2
    ]
    out_specs = [
        pl.BlockSpec((R, C), lambda i: (i, 0)),
        # TODO(synk): lane-narrow (T < 128) attention writeback; pad T or drop this
        # output entirely when the head-0 attention map is not consumed downstream.
        pl.BlockSpec((block_b, T, T), lambda i: (i, 0, 0)),
    ]
    out_shape = [
        jax.ShapeDtypeStruct((B * T, C), jnp.float32),
        jax.ShapeDtypeStruct((B, T, T), jnp.float32),
    ]

    # Raise the scoped-VMEM limit only when the resident footprint needs it, and
    # never above the device's physical per-core capacity (64 MiB on v7x).
    est = _estimated_vmem_bytes(C, H, n_head, block_b, T, mm.itemsize,
                                weight_buffers) + (4 << 20)
    cap = _vmem_capacity_bytes() - (4 << 20)
    vmem_limit = int(min(est, cap)) if est > (16 << 20) else None

    kernel = functools.partial(
        block_kernel, n_head=n_head, head_size=head_size, block_b=block_b,
        seq_len=T, causal=causal, approx_recip=approx_recip)

    out2d, attn = pl.pallas_call(
        kernel,
        grid=grid,
        in_specs=in_specs,
        out_specs=out_specs,
        out_shape=out_shape,
        compiler_params=pltpu.CompilerParams(
            dimension_semantics=("parallel",),
            vmem_limit_bytes=vmem_limit),
    )(x2d, ln1_g, ln1_b, wqkv, wproj_m, bproj,
      ln2_g, ln2_b, w1_m, b1, w2_m, b2)

    return out2d.reshape(B, T, C), attn


# ----------------------------------------------------------------------------
# Parameters + pure-JAX reference (matches the PyTorch forward)
# ----------------------------------------------------------------------------
def init_params(key, n_embd, n_head):
    """Deterministic synthetic parameters (same shapes as the PyTorch module)."""
    C, H = n_embd, 4 * n_embd
    ks = jax.random.split(key, 10)

    def lin(k, fan_in, shape):
        bound = 1.0 / math.sqrt(fan_in)
        return jax.random.uniform(k, shape, jnp.float32, -bound, bound)

    ln1_g = jnp.ones((1, C), jnp.float32)
    ln1_b = jnp.zeros((1, C), jnp.float32)
    wq = lin(ks[0], C, (C, C))            # (in, out) == concat of per-head (C, hs)
    wk = lin(ks[1], C, (C, C))
    wv = lin(ks[2], C, (C, C))
    wproj = lin(ks[3], C, (C, C))
    bproj = lin(ks[4], C, (1, C))
    ln2_g = jnp.ones((1, C), jnp.float32)
    ln2_b = jnp.zeros((1, C), jnp.float32)
    w1 = lin(ks[5], C, (C, H))
    b1 = lin(ks[6], C, (1, H))
    w2 = lin(ks[7], H, (H, C))
    b2 = lin(ks[8], H, (1, C))
    return (ln1_g, ln1_b, wq, wk, wv, wproj, bproj,
            ln2_g, ln2_b, w1, b1, w2, b2)


def reference_block(x, params, n_head, causal=True):
    """Pure-JAX reference matching the PyTorch forward, for verification."""
    (ln1_g, ln1_b, wq, wk, wv, wproj, bproj,
     ln2_g, ln2_b, w1, b1, w2, b2) = params
    B, T, C = x.shape
    hs = C // n_head

    def ln(h, g, b):
        m = h.mean(-1, keepdims=True)
        v = ((h - m) ** 2).mean(-1, keepdims=True)
        return (h - m) / jnp.sqrt(v + 1e-5) * g[0] + b[0]

    xln = ln(x, ln1_g, ln1_b)
    q = xln @ wq
    k = xln @ wk
    v = xln @ wv
    outs, attn0 = [], None
    for h in range(n_head):
        qh, kh, vh = (a[..., h * hs:(h + 1) * hs] for a in (q, k, v))
        wei = jnp.einsum('btd,bsd->bts', qh, kh) * C ** (-0.5)
        if causal:
            mask = jnp.tril(jnp.ones((T, T), bool))
            wei = jnp.where(mask, wei, -jnp.inf)
        wei = jax.nn.softmax(wei, axis=-1)
        if h == 0:
            attn0 = wei
        outs.append(jnp.einsum('bts,bsd->btd', wei, vh))
    sa = jnp.concatenate(outs, axis=-1)
    y = sa @ wproj + bproj[0]
    x1 = x + y
    x2 = ln(x1, ln2_g, ln2_b)
    ff = jnp.maximum(x2 @ w1 + b1[0], 0.0) @ w2 + b2[0]
    return x1 + ff, attn0


if __name__ == "__main__":
    B, T, n_embd, n_head = 2, 8, 32, 4          # block_size = T = 8, head_size = 8
    key = jax.random.PRNGKey(0)
    kx, kp = jax.random.split(key)
    x = jax.random.normal(kx, (B, T, n_embd), jnp.float32)
    params = init_params(kp, n_embd, n_head)

    out_gold, attn_gold = reference_block(x, params, n_head, causal=True)

    # Accuracy path ('Decoder' == causal): f32 matmul operands + exact softmax div.
    out, attn = transformer_block(x, params, n_head=n_head, causal=True,
                                  compute_dtype=jnp.float32, approx_recip=False)
    out, attn = jax.block_until_ready((out, attn))
    assert jnp.allclose(out, out_gold, atol=1e-4, rtol=1e-4), "f32 output mismatch"
    assert jnp.allclose(attn, attn_gold, atol=1e-4, rtol=1e-4), "f32 attn mismatch"

    # Perf path: bf16 MXU operands (f32 accumulate), EUP approx-reciprocal softmax,
    # block_b=2 exercises multi-batch-row batching per grid step.
    out_bf, attn_bf = transformer_block(x, params, n_head=n_head, causal=True,
                                        compute_dtype=jnp.bfloat16, block_b=2,
                                        approx_recip=True)
    out_bf, attn_bf = jax.block_until_ready((out_bf, attn_bf))
    assert jnp.allclose(out_bf, out_gold, atol=1e-1, rtol=1e-1), "bf16 output mismatch"
    assert jnp.allclose(attn_bf, attn_gold, atol=2e-2, rtol=2e-2), "bf16 attn mismatch"

    print("KERNEL_OK")
</pallas_src>

<mosaic_0001>
module attributes {stable_mosaic.version = 11 : i64} {
  func.func @_probe_kernel(%arg0: i32, %arg1: memref<8x128xf32, #tpu.memory_space<vmem>>, %arg2: memref<8x128xf32, #tpu.memory_space<vmem>>) attributes {dimension_semantics = [#tpu.dimension_semantics<arbitrary>], iteration_bounds = array<i64: 1>, scalar_prefetch = 0 : i64, scratch_operands = 0 : i64, tpu.core_type = #tpu.core_type<tc>, window_params = [{pipeline_mode = #tpu.pipeline_mode<synchronous>, transform_indices = @transform_0, window_bounds = array<i64: 8, 128>}, {transform_indices = @transform_1, window_bounds = array<i64: 8, 128>}]} {
    %c0 = arith.constant 0 : index
    %c0_0 = arith.constant 0 : index
    %0 = vector.load %arg1[%c0, %c0_0] : memref<8x128xf32, #tpu.memory_space<vmem>>, vector<8x128xf32>
    %c0_1 = arith.constant 0 : index
    %c0_2 = arith.constant 0 : index
    %1 = vector.load %arg2[%c0_1, %c0_2] : memref<8x128xf32, #tpu.memory_space<vmem>>, vector<8x128xf32>
    tpu.vector_store %arg2[%c0_1, %c0_2], %0 {strides = array<i32>} : memref<8x128xf32, #tpu.memory_space<vmem>>, vector<8x128xf32>,
    return
  }
  func.func @transform_0(%arg0: i32) -> (i32, i32) {
    %c0_i32 = arith.constant 0 : i32
    %c0_i32_0 = arith.constant 0 : i32
    %c0_i32_1 = arith.constant 0 : i32
    return %c0_i32, %c0_i32_0 : i32, i32
  }
  func.func @transform_1(%arg0: i32) -> (i32, i32) {
    %c0_i32 = arith.constant 0 : i32
    %c0_i32_0 = arith.constant 0 : i32
    return %arg0, %c0_i32 : i32, i32
  }
}

module attributes {stable_mosaic.version = 11 : i64} {
  func.func @block_kernel(%arg0: i32, %arg1: memref<8x32xf32, #tpu.memory_space<vmem>>, %arg2: memref<1x32xf32, #tpu.memory_space<vmem>>, %arg3: memref<1x32xf32, #tpu.memory_space<vmem>>, %arg4: memref<32x96xf32, #tpu.memory_space<vmem>>, %arg5: memref<32x32xf32, #tpu.memory_space<vmem>>, %arg6: memref<1x32xf32, #tpu.memory_space<vmem>>, %arg7: memref<1x32xf32, #tpu.memory_space<vmem>>, %arg8: memref<1x32xf32, #tpu.memory_space<vmem>>, %arg9: memref<32x128xf32, #tpu.memory_space<vmem>>, %arg10: memref<1x128xf32, #tpu.memory_space<vmem>>, %arg11: memref<128x32xf32, #tpu.memory_space<vmem>>, %arg12: memref<1x32xf32, #tpu.memory_space<vmem>>, %arg13: memref<8x32xf32, #tpu.memory_space<vmem>>, %arg14: memref<1x8x8xf32, #tpu.memory_space<vmem>>) attributes {dimension_semantics = [#tpu.dimension_semantics<parallel>], iteration_bounds = array<i64: 2>, scalar_prefetch = 0 : i64, scratch_operands = 0 : i64, tpu.core_type = #tpu.core_type<tc>, window_params = [{transform_indices = @transform_0, window_bounds = array<i64: 8, 32>}, {pipeline_mode = #tpu.pipeline_mode<synchronous>, transform_indices = @transform_1, window_bounds = array<i64: 1, 32>}, {pipeline_mode = #tpu.pipeline_mode<synchronous>, transform_indices = @transform_2, window_bounds = array<i64: 1, 32>}, {pipeline_mode = #tpu.pipeline_mode<synchronous>, transform_indices = @transform_3, window_bounds = array<i64: 32, 96>}, {pipeline_mode = #tpu.pipeline_mode<synchronous>, transform_indices = @transform_4, window_bounds = array<i64: 32, 32>}, {pipeline_mode = #tpu.pipeline_mode<synchronous>, transform_indices = @transform_5, window_bounds = array<i64: 1, 32>}, {pipeline_mode = #tpu.pipeline_mode<synchronous>, transform_indices = @transform_6, window_bounds = array<i64: 1, 32>}, {pipeline_mode = #tpu.pipeline_mode<synchronous>, transform_indices = @transform_7, window_bounds = array<i64: 1, 32>}, {pipeline_mode = #tpu.pipeline_mode<synchronous>, transform_indices = @transform_8, window_bounds = array<i64: 32, 128>}, {pipeline_mode = #tpu.pipeline_mode<synchronous>, transform_indices = @transform_9, window_bounds = array<i64: 1, 128>}, {pipeline_mode = #tpu.pipeline_mode<synchronous>, transform_indices = @transform_10, window_bounds = array<i64: 128, 32>}, {pipeline_mode = #tpu.pipeline_mode<synchronous>, transform_indices = @transform_11, window_bounds = array<i64: 1, 32>}, {transform_indices = @transform_12, window_bounds = array<i64: 8, 32>}, {transform_indices = @transform_13, window_bounds = array<i64: 1, 8, 8>}]} {
    %c0 = arith.constant 0 : index
    %c0_0 = arith.constant 0 : index
    %0 = vector.load %arg1[%c0, %c0_0] : memref<8x32xf32, #tpu.memory_space<vmem>>, vector<8x32xf32>
    %c0_1 = arith.constant 0 : index
    %c0_2 = arith.constant 0 : index
    %1 = vector.load %arg2[%c0_1, %c0_2] : memref<1x32xf32, #tpu.memory_space<vmem>>, vector<1x32xf32>
    %2 = vector.shape_cast %1 : vector<1x32xf32> to vector<32xf32>
    %c0_3 = arith.constant 0 : index
    %c0_4 = arith.constant 0 : index
    %3 = vector.load %arg3[%c0_3, %c0_4] : memref<1x32xf32, #tpu.memory_space<vmem>>, vector<1x32xf32>
    %4 = vector.shape_cast %3 : vector<1x32xf32> to vector<32xf32>
    %cst = arith.constant dense<0.000000e+00> : vector<8xf32>
    %5 = vector.multi_reduction <add>, %0, %cst [1] : vector<8x32xf32> to vector<8xf32>
    %6 = vector.shape_cast %5 : vector<8xf32> to vector<8x1xf32>
    %cst_5 = arith.constant 3.200000e+01 : f32
    %7 = vector.broadcast %cst_5 : f32 to vector<8x1xf32>
    %8 = arith.divf %6, %7 : vector<8x1xf32>
    %9 = vector.broadcast %8 : vector<8x1xf32> to vector<8x32xf32>
    %10 = arith.subf %0, %9 : vector<8x32xf32>
    %11 = arith.mulf %10, %10 : vector<8x32xf32>
    %cst_6 = arith.constant dense<0.000000e+00> : vector<8xf32>
    %12 = vector.multi_reduction <add>, %11, %cst_6 [1] : vector<8x32xf32> to vector<8xf32>
    %13 = vector.shape_cast %12 : vector<8xf32> to vector<8x1xf32>
    %cst_7 = arith.constant 3.200000e+01 : f32
    %14 = vector.broadcast %cst_7 : f32 to vector<8x1xf32>
    %15 = arith.divf %13, %14 : vector<8x1xf32>
    %16 = vector.broadcast %8 : vector<8x1xf32> to vector<8x32xf32>
    %17 = arith.subf %0, %16 : vector<8x32xf32>
    %cst_8 = arith.constant 9.99999974E-6 : f32
    %18 = vector.broadcast %cst_8 : f32 to vector<8x1xf32>
    %19 = arith.addf %15, %18 : vector<8x1xf32>
    %20 = math.rsqrt %19 : vector<8x1xf32>
    %21 = vector.broadcast %20 : vector<8x1xf32> to vector<8x32xf32>
    %22 = arith.mulf %17, %21 : vector<8x32xf32>
    %23 = vector.shape_cast %2 : vector<32xf32> to vector<1x32xf32>
    %24 = vector.broadcast %23 : vector<1x32xf32> to vector<8x32xf32>
    %25 = arith.mulf %22, %24 : vector<8x32xf32>
    %26 = vector.shape_cast %4 : vector<32xf32> to vector<1x32xf32>
    %27 = vector.broadcast %26 : vector<1x32xf32> to vector<8x32xf32>
    %28 = arith.addf %25, %27 : vector<8x32xf32>
    %c0_9 = arith.constant 0 : index
    %c0_10 = arith.constant 0 : index
    %29 = vector.load %arg4[%c0_9, %c0_10] : memref<32x96xf32, #tpu.memory_space<vmem>>, vector<32x96xf32>
    %cst_11 = arith.constant dense<0.000000e+00> : vector<8x96xf32>
    %30 = tpu.matmul %28, %29, %cst_11 {dimension_numbers = #tpu.dot_dimension_numbers<[1], [0], [0], [1], [0, 0, 1, 1], [], []>} : vector<8x32xf32>, vector<32x96xf32>, vector<8x96xf32> -> vector<8x96xf32>
    %31 = vector.extract_strided_slice %30 {offsets = [0, 0], sizes = [8, 32], strides = [1, 1]} : vector<8x96xf32> to vector<8x32xf32>
    %32 = vector.extract_strided_slice %30 {offsets = [0, 32], sizes = [8, 32], strides = [1, 1]} : vector<8x96xf32> to vector<8x32xf32>
    %33 = vector.extract_strided_slice %30 {offsets = [0, 64], sizes = [8, 32], strides = [1, 1]} : vector<8x96xf32> to vector<8x32xf32>
    %34 = vector.shape_cast %31 : vector<8x32xf32> to vector<8x4x8xf32>
    %35 = tpu.transpose %34, [1, 0, 2] : vector<8x4x8xf32> -> vector<4x8x8xf32>
    %36 = vector.shape_cast %32 : vector<8x32xf32> to vector<8x4x8xf32>
    %37 = tpu.transpose %36, [1, 0, 2] : vector<8x4x8xf32> -> vector<4x8x8xf32>
    %38 = vector.shape_cast %33 : vector<8x32xf32> to vector<8x4x8xf32>
    %39 = tpu.transpose %38, [1, 0, 2] : vector<8x4x8xf32> -> vector<4x8x8xf32>
    "tpu.trace_start"() <{level = 10 : i32, message = "gqd,gkd->gqk"}> : () -> ()
    %cst_12 = arith.constant dense<0.000000e+00> : vector<4x8x8xf32>
    %40 = tpu.matmul %35, %37, %cst_12 {dimension_numbers = #tpu.dot_dimension_numbers<[2], [2], [1], [1], [0, 0, 0, 1, 1, 1], [0], [0]>} : vector<4x8x8xf32>, vector<4x8x8xf32>, vector<4x8x8xf32> -> vector<4x8x8xf32>
    "tpu.trace_stop"() : () -> ()
    %41 = tpu.iota {dimensions = array<i32: 0>} : vector<8x8xi32>
    %42 = tpu.iota {dimensions = array<i32: 1>} : vector<8x8xi32>
    %43 = arith.cmpi sle, %42, %41 : vector<8x8xi32>
    %44 = vector.shape_cast %43 : vector<8x8xi1> to vector<1x8x8xi1>
    %cst_13 = arith.constant -1.000000e+30 : f32
    %45 = vector.shape_cast %44 : vector<1x8x8xi1> to vector<1x8x8xi1>
    %46 = vector.broadcast %45 : vector<1x8x8xi1> to vector<4x8x8xi1>
    %47 = vector.broadcast %cst_13 : f32 to vector<4x8x8xf32>
    %48 = arith.select %46, %40, %47 : vector<4x8x8xi1>, vector<4x8x8xf32>
    %cst_14 = arith.constant dense<0xFF800000> : vector<4x8xf32>
    %49 = vector.multi_reduction <maximumf>, %48, %cst_14 [2] : vector<4x8x8xf32> to vector<4x8xf32>
    %50 = vector.shape_cast %49 : vector<4x8xf32> to vector<4x8x1xf32>
    %51 = vector.broadcast %50 : vector<4x8x1xf32> to vector<4x8x8xf32>
    %52 = arith.subf %48, %51 : vector<4x8x8xf32>
    %53 = math.exp %52 : vector<4x8x8xf32>
    %cst_15 = arith.constant dense<0.000000e+00> : vector<4x8xf32>
    %54 = vector.multi_reduction <add>, %53, %cst_15 [2] : vector<4x8x8xf32> to vector<4x8xf32>
    %55 = vector.shape_cast %54 : vector<4x8xf32> to vector<4x8x1xf32>
    %56 = vector.broadcast %55 : vector<4x8x1xf32> to vector<4x8x8xf32>
    %57 = arith.divf %53, %56 : vector<4x8x8xf32>
    %58 = vector.extract_strided_slice %57 {offsets = [0, 0, 0], sizes = [1, 8, 8], strides = [1, 1, 1]} : vector<4x8x8xf32> to vector<1x8x8xf32>
    %c0_16 = arith.constant 0 : index
    %c0_17 = arith.constant 0 : index
    %c0_18 = arith.constant 0 : index
    %59 = vector.load %arg14[%c0_16, %c0_17, %c0_18] : memref<1x8x8xf32, #tpu.memory_space<vmem>>, vector<1x8x8xf32>
    tpu.vector_store %arg14[%c0_16, %c0_17, %c0_18], %58 {strides = array<i32>} : memref<1x8x8xf32, #tpu.memory_space<vmem>>, vector<1x8x8xf32>,
    "tpu.trace_start"() <{level = 10 : i32, message = "gqk,gkd->gqd"}> : () -> ()
    %cst_19 = arith.constant dense<0.000000e+00> : vector<4x8x8xf32>
    %60 = tpu.matmul %57, %39, %cst_19 {dimension_numbers = #tpu.dot_dimension_numbers<[2], [1], [1], [2], [0, 0, 0, 1, 1, 2], [0], [0]>} : vector<4x8x8xf32>, vector<4x8x8xf32>, vector<4x8x8xf32> -> vector<4x8x8xf32>
    "tpu.trace_stop"() : () -> ()
    %61 = tpu.transpose %60, [1, 0, 2] : vector<4x8x8xf32> -> vector<8x4x8xf32>
    %62 = vector.shape_cast %61 : vector<8x4x8xf32> to vector<8x32xf32>
    %c0_20 = arith.constant 0 : index
    %c0_21 = arith.constant 0 : index
    %63 = vector.load %arg5[%c0_20, %c0_21] : memref<32x32xf32, #tpu.memory_space<vmem>>, vector<32x32xf32>
    %cst_22 = arith.constant dense<0.000000e+00> : vector<8x32xf32>
    %64 = tpu.matmul %62, %63, %cst_22 {dimension_numbers = #tpu.dot_dimension_numbers<[1], [0], [0], [1], [0, 0, 1, 1], [], []>} : vector<8x32xf32>, vector<32x32xf32>, vector<8x32xf32> -> vector<8x32xf32>
    %c0_23 = arith.constant 0 : index
    %c0_24 = arith.constant 0 : index
    %65 = vector.load %arg6[%c0_23, %c0_24] : memref<1x32xf32, #tpu.memory_space<vmem>>, vector<1x32xf32>
    %66 = vector.shape_cast %65 : vector<1x32xf32> to vector<32xf32>
    %67 = vector.shape_cast %66 : vector<32xf32> to vector<1x32xf32>
    %68 = vector.broadcast %67 : vector<1x32xf32> to vector<8x32xf32>
    %69 = arith.addf %64, %68 : vector<8x32xf32>
    %70 = arith.addf %0, %69 : vector<8x32xf32>
    %c0_25 = arith.constant 0 : index
    %c0_26 = arith.constant 0 : index
    %71 = vector.load %arg7[%c0_25, %c0_26] : memref<1x32xf32, #tpu.memory_space<vmem>>, vector<1x32xf32>
    %72 = vector.shape_cast %71 : vector<1x32xf32> to vector<32xf32>
    %c0_27 = arith.constant 0 : index
    %c0_28 = arith.constant 0 : index
    %73 = vector.load %arg8[%c0_27, %c0_28] : memref<1x32xf32, #tpu.memory_space<vmem>>, vector<1x32xf32>
    %74 = vector.shape_cast %73 : vector<1x32xf32> to vector<32xf32>
    %cst_29 = arith.constant dense<0.000000e+00> : vector<8xf32>
    %75 = vector.multi_reduction <add>, %70, %cst_29 [1] : vector<8x32xf32> to vector<8xf32>
    %76 = vector.shape_cast %75 : vector<8xf32> to vector<8x1xf32>
    %cst_30 = arith.constant 3.200000e+01 : f32
    %77 = vector.broadcast %cst_30 : f32 to vector<8x1xf32>
    %78 = arith.divf %76, %77 : vector<8x1xf32>
    %79 = vector.broadcast %78 : vector<8x1xf32> to vector<8x32xf32>
    %80 = arith.subf %70, %79 : vector<8x32xf32>
    %81 = arith.mulf %80, %80 : vector<8x32xf32>
    %cst_31 = arith.constant dense<0.000000e+00> : vector<8xf32>
    %82 = vector.multi_reduction <add>, %81, %cst_31 [1] : vector<8x32xf32> to vector<8xf32>
    %83 = vector.shape_cast %82 : vector<8xf32> to vector<8x1xf32>
    %cst_32 = arith.constant 3.200000e+01 : f32
    %84 = vector.broadcast %cst_32 : f32 to vector<8x1xf32>
    %85 = arith.divf %83, %84 : vector<8x1xf32>
    %86 = vector.broadcast %78 : vector<8x1xf32> to vector<8x32xf32>
    %87 = arith.subf %70, %86 : vector<8x32xf32>
    %cst_33 = arith.constant 9.99999974E-6 : f32
    %88 = vector.broadcast %cst_33 : f32 to vector<8x1xf32>
    %89 = arith.addf %85, %88 : vector<8x1xf32>
    %90 = math.rsqrt %89 : vector<8x1xf32>
    %91 = vector.broadcast %90 : vector<8x1xf32> to vector<8x32xf32>
    %92 = arith.mulf %87, %91 : vector<8x32xf32>
    %93 = vector.shape_cast %72 : vector<32xf32> to vector<1x32xf32>
    %94 = vector.broadcast %93 : vector<1x32xf32> to vector<8x32xf32>
    %95 = arith.mulf %92, %94 : vector<8x32xf32>
    %96 = vector.shape_cast %74 : vector<32xf32> to vector<1x32xf32>
    %97 = vector.broadcast %96 : vector<1x32xf32> to vector<8x32xf32>
    %98 = arith.addf %95, %97 : vector<8x32xf32>
    %c0_34 = arith.constant 0 : index
    %c0_35 = arith.constant 0 : index
    %99 = vector.load %arg9[%c0_34, %c0_35] : memref<32x128xf32, #tpu.memory_space<vmem>>, vector<32x128xf32>
    %cst_36 = arith.constant dense<0.000000e+00> : vector<8x128xf32>
    %100 = tpu.matmul %98, %99, %cst_36 {dimension_numbers = #tpu.dot_dimension_numbers<[1], [0], [0], [1], [0, 0, 1, 1], [], []>} : vector<8x32xf32>, vector<32x128xf32>, vector<8x128xf32> -> vector<8x128xf32>
    %c0_37 = arith.constant 0 : index
    %c0_38 = arith.constant 0 : index
    %101 = vector.load %arg10[%c0_37, %c0_38] : memref<1x128xf32, #tpu.memory_space<vmem>>, vector<1x128xf32>
    %102 = vector.shape_cast %101 : vector<1x128xf32> to vector<128xf32>
    %103 = vector.shape_cast %102 : vector<128xf32> to vector<1x128xf32>
    %104 = vector.broadcast %103 : vector<1x128xf32> to vector<8x128xf32>
    %105 = arith.addf %100, %104 : vector<8x128xf32>
    %cst_39 = arith.constant 0.000000e+00 : f32
    %106 = vector.broadcast %cst_39 : f32 to vector<8x128xf32>
    %107 = arith.maximumf %105, %106 : vector<8x128xf32>
    %c0_40 = arith.constant 0 : index
    %c0_41 = arith.constant 0 : index
    %108 = vector.load %arg11[%c0_40, %c0_41] : memref<128x32xf32, #tpu.memory_space<vmem>>, vector<128x32xf32>
    %cst_42 = arith.constant dense<0.000000e+00> : vector<8x32xf32>
    %109 = tpu.matmul %107, %108, %cst_42 {dimension_numbers = #tpu.dot_dimension_numbers<[1], [0], [0], [1], [0, 0, 1, 1], [], []>} : vector<8x128xf32>, vector<128x32xf32>, vector<8x32xf32> -> vector<8x32xf32>
    %c0_43 = arith.constant 0 : index
    %c0_44 = arith.constant 0 : index
    %110 = vector.load %arg12[%c0_43, %c0_44] : memref<1x32xf32, #tpu.memory_space<vmem>>, vector<1x32xf32>
    %111 = vector.shape_cast %110 : vector<1x32xf32> to vector<32xf32>
    %112 = vector.shape_cast %111 : vector<32xf32> to vector<1x32xf32>
    %113 = vector.broadcast %112 : vector<1x32xf32> to vector<8x32xf32>
    %114 = arith.addf %109, %113 : vector<8x32xf32>
    %115 = arith.addf %70, %114 : vector<8x32xf32>
    %c0_45 = arith.constant 0 : index
    %c0_46 = arith.constant 0 : index
    %116 = vector.load %arg13[%c0_45, %c0_46] : memref<8x32xf32, #tpu.memory_space<vmem>>, vector<8x32xf32>
    tpu.vector_store %arg13[%c0_45, %c0_46], %115 {strides = array<i32>} : memref<8x32xf32, #tpu.memory_space<vmem>>, vector<8x32xf32>,
    return
  }
  func.func @transform_0(%arg0: i32) -> (i32, i32) {
    %c0_i32 = arith.constant 0 : i32
    %c0_i32_0 = arith.constant 0 : i32
    return %arg0, %c0_i32 : i32, i32
  }
  func.func @transform_1(%arg0: i32) -> (i32, i32) {
    %c0_i32 = arith.constant 0 : i32
    %c0_i32_0 = arith.constant 0 : i32
    %c0_i32_1 = arith.constant 0 : i32
    return %c0_i32, %c0_i32_0 : i32, i32
  }
  func.func @transform_2(%arg0: i32) -> (i32, i32) {
    %c0_i32 = arith.constant 0 : i32
    %c0_i32_0 = arith.constant 0 : i32
    %c0_i32_1 = arith.constant 0 : i32
    return %c0_i32, %c0_i32_0 : i32, i32
  }
  func.func @transform_3(%arg0: i32) -> (i32, i32) {
    %c0_i32 = arith.constant 0 : i32
    %c0_i32_0 = arith.constant 0 : i32
    %c0_i32_1 = arith.constant 0 : i32
    return %c0_i32, %c0_i32_0 : i32, i32
  }
  func.func @transform_4(%arg0: i32) -> (i32, i32) {
    %c0_i32 = arith.constant 0 : i32
    %c0_i32_0 = arith.constant 0 : i32
    %c0_i32_1 = arith.constant 0 : i32
    return %c0_i32, %c0_i32_0 : i32, i32
  }
  func.func @transform_5(%arg0: i32) -> (i32, i32) {
    %c0_i32 = arith.constant 0 : i32
    %c0_i32_0 = arith.constant 0 : i32
    %c0_i32_1 = arith.constant 0 : i32
    return %c0_i32, %c0_i32_0 : i32, i32
  }
  func.func @transform_6(%arg0: i32) -> (i32, i32) {
    %c0_i32 = arith.constant 0 : i32
    %c0_i32_0 = arith.constant 0 : i32
    %c0_i32_1 = arith.constant 0 : i32
    return %c0_i32, %c0_i32_0 : i32, i32
  }
  func.func @transform_7(%arg0: i32) -> (i32, i32) {
    %c0_i32 = arith.constant 0 : i32
    %c0_i32_0 = arith.constant 0 : i32
    %c0_i32_1 = arith.constant 0 : i32
    return %c0_i32, %c0_i32_0 : i32, i32
  }
  func.func @transform_8(%arg0: i32) -> (i32, i32) {
    %c0_i32 = arith.constant 0 : i32
    %c0_i32_0 = arith.constant 0 : i32
    %c0_i32_1 = arith.constant 0 : i32
    return %c0_i32, %c0_i32_0 : i32, i32
  }
  func.func @transform_9(%arg0: i32) -> (i32, i32) {
    %c0_i32 = arith.constant 0 : i32
    %c0_i32_0 = arith.constant 0 : i32
    %c0_i32_1 = arith.constant 0 : i32
    return %c0_i32, %c0_i32_0 : i32, i32
  }
  func.func @transform_10(%arg0: i32) -> (i32, i32) {
    %c0_i32 = arith.constant 0 : i32
    %c0_i32_0 = arith.constant 0 : i32
    %c0_i32_1 = arith.constant 0 : i32
    return %c0_i32, %c0_i32_0 : i32, i32
  }
  func.func @transform_11(%arg0: i32) -> (i32, i32) {
    %c0_i32 = arith.constant 0 : i32
    %c0_i32_0 = arith.constant 0 : i32
    %c0_i32_1 = arith.constant 0 : i32
    return %c0_i32, %c0_i32_0 : i32, i32
  }
  func.func @transform_12(%arg0: i32) -> (i32, i32) {
    %c0_i32 = arith.constant 0 : i32
    %c0_i32_0 = arith.constant 0 : i32
    return %arg0, %c0_i32 : i32, i32
  }
  func.func @transform_13(%arg0: i32) -> (i32, i32, i32) {
    %c0_i32 = arith.constant 0 : i32
    %c0_i32_0 = arith.constant 0 : i32
    %c0_i32_1 = arith.constant 0 : i32
    return %arg0, %c0_i32, %c0_i32_0 : i32, i32, i32
  }
}

</mosaic_0001>

<llo_original>
// kernel: tpu_custom_call.1
$region0: #{tpu_custom_call.1}
  #allocation0 [shape = 'u32[]', space=smem, size = 0x4, offset = 0x4, fixed_abs, tag = 'smem constant byte address 0x4 - core index']
  #allocation1 [shape = 'u32[144,128]{1,0:T(1,128)}', space=vmem, size = 0x12000, scoped, tag = 'internal scratch']
  %s0 = inlined_call_operand.hbm [shape: f32[8,128], index: 0, kind: input, shape index: {}]
  %s1 = inlined_call_operand.hbm [shape: f32[8,128], index: 1, kind: output, shape index: {}]
  %s2 = sld [smem:[#allocation0]]
  $region18: #{tpu_custom_call.1} parent=0
    _
  %s4 = ssub.s32 1, %s2
  %s5 = scalar_select 0, %s4, %s2
  $region1: #{tpu_custom_call.1} parent=0
    #allocation2 [shape = 'u8[4096]{0}', space=vmem, size = 0x1000, scoped, tag = 'input window, operand 0, single buffered']
    #allocation3 [shape = 's32[1]{0}', space=sflag, size = 0x4, scoped, tag = 'scoped memory for tpu_custom_call.1']
    #allocation4 [shape = 's32[1]{0}', space=sflag, size = 0x4, scoped, tag = 'scoped memory for tpu_custom_call.1']
    #allocation5 [shape = 'u8[4096]{0}', space=vmem, size = 0x1000, scoped, tag = 'output window, operand 0, single buffered']
    %6 = vsyncpa [#allocation3], 0
    %7 = vsyncpa [#allocation4], 0
    // Predicated region
    $region2: #{tpu_custom_call.1} parent=1 // pred_check
      _
    $region3: #{tpu_custom_call.1} parent=1 // pred_check_branch
      %9 = sbr.rel (0) target = $region5
    $region4: #{tpu_custom_call.1} parent=1 // pred_region
      %s11 = ssub.s32 128, 128
      %12 = vsyncadd [#allocation3], %s11
      %s14 = sshll.u32 [#allocation2], 4
      %s15 = int_to_ptr.vmem [resolvable:$true] %s14
      %17 = dma.hbm_to_vmem [thread:$0]  %s0, 128, %s15, [#allocation3]
    $region5: #{tpu_custom_call.1} parent=1 // pred_fallthru
      _
    // Predicated region
    $region6: #{tpu_custom_call.1} parent=1 // pred_check
      _
    $region7: #{tpu_custom_call.1} parent=1 // pred_check_branch
      %19 = sbr.rel (0) target = $region9
    $region8: #{tpu_custom_call.1} parent=1 // pred_region
      %20 = dma.done [#allocation3], 128
    $region9: #{tpu_custom_call.1} parent=1 // pred_fallthru
      _
    %v21 = vld [vmem:[#allocation2] sm:$0xff]
    %22 = vst [vmem:[#allocation5] sm:$0xff] %v21
    // Predicated region
    $region10: #{tpu_custom_call.1} parent=1 // pred_check
      _
    $region11: #{tpu_custom_call.1} parent=1 // pred_check_branch
      %24 = sbr.rel (0) target = $region13
    $region12: #{tpu_custom_call.1} parent=1 // pred_region
      %s26 = ssub.s32 128, 128
      %27 = vsyncadd [#allocation4], %s26
      %s29 = sshll.u32 [#allocation5], 4
      %s30 = int_to_ptr.vmem [resolvable:$true] %s29
      %32 = dma.vmem_to_hbm [thread:$0]  %s30, 128, %s1, [#allocation4]
    $region13: #{tpu_custom_call.1} parent=1 // pred_fallthru
      _
    // Predicated region
    $region14: #{tpu_custom_call.1} parent=1 // pred_check
      _
    $region15: #{tpu_custom_call.1} parent=1 // pred_check_branch
      %34 = sbr.rel (0) target = $region17
    $region16: #{tpu_custom_call.1} parent=1 // pred_region
      %35 = dma.done [#allocation4], 128
    $region17: #{tpu_custom_call.1} parent=1 // pred_fallthru
      _
    %36 = vsyncpa [#allocation3], 1
    %37 = vsyncpa [#allocation4], 1

// kernel: tpu_custom_call.1
$region0: #{tpu_custom_call.1}
  #allocation0 [shape = 'u32[]', space=smem, size = 0x4, offset = 0x4, fixed_abs, tag = 'smem constant byte address 0x4 - core index']
  #allocation1 [shape = 'u32[144,128]{1,0:T(1,128)}', space=vmem, size = 0x12000, scoped, tag = 'internal scratch']
  %s0 = inlined_call_operand.vmem [shape: f32[16,32], index: 0, kind: input, shape index: {}]
  %s1 = inlined_call_operand.vmem [shape: f32[1,32], index: 1, kind: input, shape index: {}]
  %s2 = inlined_call_operand.vmem [shape: f32[1,32], index: 2, kind: input, shape index: {}]
  %s3 = inlined_call_operand.vmem [shape: f32[32,96], index: 3, kind: input, shape index: {}]
  %s4 = inlined_call_operand.vmem [shape: f32[32,32], index: 4, kind: input, shape index: {}]
  %s5 = inlined_call_operand.vmem [shape: f32[1,32], index: 5, kind: input, shape index: {}]
  %s6 = inlined_call_operand.vmem [shape: f32[1,32], index: 6, kind: input, shape index: {}]
  %s7 = inlined_call_operand.vmem [shape: f32[1,32], index: 7, kind: input, shape index: {}]
  %s8 = inlined_call_operand.vmem [shape: f32[32,128], index: 8, kind: input, shape index: {}]
  %s9 = inlined_call_operand.vmem [shape: f32[1,128], index: 9, kind: input, shape index: {}]
  %s10 = inlined_call_operand.vmem [shape: f32[128,32], index: 10, kind: input, shape index: {}]
  %s11 = inlined_call_operand.vmem [shape: f32[1,32], index: 11, kind: input, shape index: {}]
  %s12 = inlined_call_operand.hbm [shape: f32[16,32], index: 12, kind: output, shape index: {0}]
  %s13 = inlined_call_operand.hbm [shape: f32[2,8,8], index: 13, kind: output, shape index: {1}]
  %14 = xla_tuple %s12, %s13
  %s15 = sld [smem:[#allocation0]]
  $region89: #{tpu_custom_call.1} parent=0
    _
  %s17 = ssub.s32 1, %s15
  %s18 = scalar_select 0, %s17, %s15
  $region1: #{tpu_custom_call.1} parent=0
    #allocation2 [shape = 'u8[8192]{0}', space=vmem, size = 0x2000, scoped, tag = 'output window, operand 0']
    #allocation3 [shape = 's32[2]{0}', space=sflag, size = 0x8, scoped, tag = 'scoped memory for tpu_custom_call.1']
    #allocation4 [shape = 'u8[8192]{0}', space=vmem, size = 0x2000, scoped, tag = 'output window, operand 1']
    #allocation5 [shape = 's32[2]{0}', space=sflag, size = 0x8, scoped, tag = 'scoped memory for tpu_custom_call.1']
    %19 = vsyncpa [#allocation3], 0
    %s20 = scalar_lea.sflag [#allocation3], 1
    %21 = vsyncpa %s20, 0
    %22 = vsyncpa [#allocation5], 0
    %s23 = scalar_lea.sflag [#allocation5], 1
    %24 = vsyncpa %s23, 0
    loop: start=0, step=1, limit=4
    $region2: #{tpu_custom_call.1} parent=1 // loop_pre_header
      _
    $region3: #{tpu_custom_call.1} parent=1 // loop_header
      %s26 = sphi 0, %s30
      %p27 = scmp.ge.s32.totalorder %s26, 4
      %s36 = sphi 0, %s38
      %s39 = sphi 0, %s36
      %s40 = sphi 0, %s39
      %s56 = sphi 0, %s40
      %s60 = sphi 0, %s60
      %s62 = sphi 0, %s60
      %s63 = sphi 0, %s62
      %s77 = sphi 0, %s63
      %s81 = sphi 0, %s81
      %s83 = sphi 0, %s81
      %s84 = sphi 0, %s83
      %s98 = sphi 0, %s84
      %s102 = sphi 0, %s102
      %s104 = sphi 0, %s102
      %s105 = sphi 0, %s104
      %s119 = sphi 0, %s105
      %s123 = sphi 0, %s123
      %s125 = sphi 0, %s123
      %s126 = sphi 0, %s125
      %s140 = sphi 0, %s126
      %s144 = sphi 0, %s144
      %s146 = sphi 0, %s144
      %s147 = sphi 0, %s146
      %s161 = sphi 0, %s147
      %s165 = sphi 0, %s165
      %s167 = sphi 0, %s165
      %s168 = sphi 0, %s167
      %s182 = sphi 0, %s168
      %s186 = sphi 0, %s186
      %s188 = sphi 0, %s186
      %s189 = sphi 0, %s188
      %s203 = sphi 0, %s189
      %s207 = sphi 0, %s207
      %s209 = sphi 0, %s207
      %s210 = sphi 0, %s209
      %s224 = sphi 0, %s210
      %s228 = sphi 0, %s228
      %s230 = sphi 0, %s228
      %s231 = sphi 0, %s230
      %s245 = sphi 0, %s231
      %s249 = sphi 0, %s249
      %s251 = sphi 0, %s249
      %s252 = sphi 0, %s251
      %s266 = sphi 0, %s252
      %s270 = sphi 0, %s270
      %s272 = sphi 0, %s270
      %s273 = sphi 0, %s272
      %s287 = sphi 0, %s273
      %s293 = sphi 0, %s295
      %s296 = sphi 0, %s293
      %s297 = sphi 0, %s296
      %s313 = sphi 0, %s297
      %s319 = sphi 0, %s321
      %s322 = sphi 0, %s319
      %s323 = sphi 0, %s322
      %s339 = sphi 0, %s323
    $region4: #{tpu_custom_call.1} parent=1 // loop_header_branch
      %29 = sbr.rel (%p27) target = $region8
    $region5: #{tpu_custom_call.1} parent=1 // loop_body
      %s31 = ssub.s32 %s26, 1
      %s32 = ssub.s32 %s26, 2
      %s33 = sadd.s32 %s26, 1
      %s34 = ssub.s32 %s26, %s33
      %p35 = scmp.eq.s32.totalorder %s34, 0
      %s37 = sadd.s32 %s36, 1
      %s38 = scalar_select %p35, %s36, %s37
      %p41 = pneg %p35
      %p42 = scmp.eq.s32.totalorder %s26, 1
      %p43 = por %p41, %p42
      %p44 = scmp.ne.s32.totalorder %s36, %s39
      %p45 = scmp.eq.s32.totalorder %s26, 0
      %p46 = por %p44, %p45
      %p47 = scmp.ne.s32.totalorder %s36, %s39
      %p48 = scmp.eq.s32.totalorder %s31, 1
      %p49 = por %p47, %p48
      %p50 = scmp.ne.s32.totalorder %s39, %s40
      %p51 = scmp.eq.s32.totalorder %s31, 0
      %p52 = por %p50, %p51
      %p53 = scmp.ne.s32.totalorder %s39, %s40
      %p54 = scmp.eq.s32.totalorder %s32, 1
      %p55 = por %p53, %p54
      %p57 = scmp.ne.s32.totalorder %s40, %s56
      %p58 = scmp.eq.s32.totalorder %s32, 0
      %p59 = por %p57, %p58
      %s61 = sadd.s32 %s60, 1
      %p64 = scmp.eq.s32.totalorder %s26, 1
      %p65 = scmp.ne.s32.totalorder %s60, %s62
      %p66 = scmp.eq.s32.totalorder %s26, 0
      %p67 = por %p65, %p66
      %p68 = scmp.ne.s32.totalorder %s60, %s62
      %p69 = scmp.eq.s32.totalorder %s31, 1
      %p70 = por %p68, %p69
      %p71 = scmp.ne.s32.totalorder %s62, %s63
      %p72 = scmp.eq.s32.totalorder %s31, 0
      %p73 = por %p71, %p72
      %p74 = scmp.ne.s32.totalorder %s62, %s63
      %p75 = scmp.eq.s32.totalorder %s32, 1
      %p76 = por %p74, %p75
      %p78 = scmp.ne.s32.totalorder %s63, %s77
      %p79 = scmp.eq.s32.totalorder %s32, 0
      %p80 = por %p78, %p79
      %s82 = sadd.s32 %s81, 1
      %p85 = scmp.eq.s32.totalorder %s26, 1
      %p86 = scmp.ne.s32.totalorder %s81, %s83
      %p87 = scmp.eq.s32.totalorder %s26, 0
      %p88 = por %p86, %p87
      %p89 = scmp.ne.s32.totalorder %s81, %s83
      %p90 = scmp.eq.s32.totalorder %s31, 1
      %p91 = por %p89, %p90
      %p92 = scmp.ne.s32.totalorder %s83, %s84
      %p93 = scmp.eq.s32.totalorder %s31, 0
      %p94 = por %p92, %p93
      %p95 = scmp.ne.s32.totalorder %s83, %s84
      %p96 = scmp.eq.s32.totalorder %s32, 1
      %p97 = por %p95, %p96
      %p99 = scmp.ne.s32.totalorder %s84, %s98
      %p100 = scmp.eq.s32.totalorder %s32, 0
      %p101 = por %p99, %p100
      %s103 = sadd.s32 %s102, 1
      %p106 = scmp.eq.s32.totalorder %s26, 1
      %p107 = scmp.ne.s32.totalorder %s102, %s104
      %p108 = scmp.eq.s32.totalorder %s26, 0
      %p109 = por %p107, %p108
      %p110 = scmp.ne.s32.totalorder %s102, %s104
      %p111 = scmp.eq.s32.totalorder %s31, 1
      %p112 = por %p110, %p111
      %p113 = scmp.ne.s32.totalorder %s104, %s105
      %p114 = scmp.eq.s32.totalorder %s31, 0
      %p115 = por %p113, %p114
      %p116 = scmp.ne.s32.totalorder %s104, %s105
      %p117 = scmp.eq.s32.totalorder %s32, 1
      %p118 = por %p116, %p117
      %p120 = scmp.ne.s32.totalorder %s105, %s119
      %p121 = scmp.eq.s32.totalorder %s32, 0
      %p122 = por %p120, %p121
      %s124 = sadd.s32 %s123, 1
      %p127 = scmp.eq.s32.totalorder %s26, 1
      %p128 = scmp.ne.s32.totalorder %s123, %s125
      %p129 = scmp.eq.s32.totalorder %s26, 0
      %p130 = por %p128, %p129
      %p131 = scmp.ne.s32.totalorder %s123, %s125
      %p132 = scmp.eq.s32.totalorder %s31, 1
      %p133 = por %p131, %p132
      %p134 = scmp.ne.s32.totalorder %s125, %s126
      %p135 = scmp.eq.s32.totalorder %s31, 0
      %p136 = por %p134, %p135
      %p137 = scmp.ne.s32.totalorder %s125, %s126
      %p138 = scmp.eq.s32.totalorder %s32, 1
      %p139 = por %p137, %p138
      %p141 = scmp.ne.s32.totalorder %s126, %s140
      %p142 = scmp.eq.s32.totalorder %s32, 0
      %p143 = por %p141, %p142
      %s145 = sadd.s32 %s144, 1
      %p148 = scmp.eq.s32.totalorder %s26, 1
      %p149 = scmp.ne.s32.totalorder %s144, %s146
      %p150 = scmp.eq.s32.totalorder %s26, 0
      %p151 = por %p149, %p150
      %p152 = scmp.ne.s32.totalorder %s144, %s146
      %p153 = scmp.eq.s32.totalorder %s31, 1
      %p154 = por %p152, %p153
      %p155 = scmp.ne.s32.totalorder %s146, %s147
      %p156 = scmp.eq.s32.totalorder %s31, 0
      %p157 = por %p155, %p156
      %p158 = scmp.ne.s32.totalorder %s146, %s147
      %p159 = scmp.eq.s32.totalorder %s32, 1
      %p160 = por %p158, %p159
      %p162 = scmp.ne.s32.totalorder %s147, %s161
      %p163 = scmp.eq.s32.totalorder %s32, 0
      %p164 = por %p162, %p163
      %s166 = sadd.s32 %s165, 1
      %p169 = scmp.eq.s32.totalorder %s26, 1
      %p170 = scmp.ne.s32.totalorder %s165, %s167
      %p171 = scmp.eq.s32.totalorder %s26, 0
      %p172 = por %p170, %p171
      %p173 = scmp.ne.s32.totalorder %s165, %s167
      %p174 = scmp.eq.s32.totalorder %s31, 1
      %p175 = por %p173, %p174
      %p176 = scmp.ne.s32.totalorder %s167, %s168
      %p177 = scmp.eq.s32.totalorder %s31, 0
      %p178 = por %p176, %p177
      %p179 = scmp.ne.s32.totalorder %s167, %s168
      %p180 = scmp.eq.s32.totalorder %s32, 1
      %p181 = por %p179, %p180
      %p183 = scmp.ne.s32.totalorder %s168, %s182
      %p184 = scmp.eq.s32.totalorder %s32, 0
      %p185 = por %p183, %p184
      %s187 = sadd.s32 %s186, 1
      %p190 = scmp.eq.s32.totalorder %s26, 1
      %p191 = scmp.ne.s32.totalorder %s186, %s188
      %p192 = scmp.eq.s32.totalorder %s26, 0
      %p193 = por %p191, %p192
      %p194 = scmp.ne.s32.totalorder %s186, %s188
      %p195 = scmp.eq.s32.totalorder %s31, 1
      %p196 = por %p194, %p195
      %p197 = scmp.ne.s32.totalorder %s188, %s189
      %p198 = scmp.eq.s32.totalorder %s31, 0
      %p199 = por %p197, %p198
      %p200 = scmp.ne.s32.totalorder %s188, %s189
      %p201 = scmp.eq.s32.totalorder %s32, 1
      %p202 = por %p200, %p201
      %p204 = scmp.ne.s32.totalorder %s189, %s203
      %p205 = scmp.eq.s32.totalorder %s32, 0
      %p206 = por %p204, %p205
      %s208 = sadd.s32 %s207, 1
      %p211 = scmp.eq.s32.totalorder %s26, 1
      %p212 = scmp.ne.s32.totalorder %s207, %s209
      %p213 = scmp.eq.s32.totalorder %s26, 0
      %p214 = por %p212, %p213
      %p215 = scmp.ne.s32.totalorder %s207, %s209
      %p216 = scmp.eq.s32.totalorder %s31, 1
      %p217 = por %p215, %p216
      %p218 = scmp.ne.s32.totalorder %s209, %s210
      %p219 = scmp.eq.s32.totalorder %s31, 0
      %p220 = por %p218, %p219
      %p221 = scmp.ne.s32.totalorder %s209, %s210
      %p222 = scmp.eq.s32.totalorder %s32, 1
      %p223 = por %p221, %p222
      %p225 = scmp.ne.s32.totalorder %s210, %s224
      %p226 = scmp.eq.s32.totalorder %s32, 0
      %p227 = por %p225, %p226
      %s229 = sadd.s32 %s228, 1
      %p232 = scmp.eq.s32.totalorder %s26, 1
      %p233 = scmp.ne.s32.totalorder %s228, %s230
      %p234 = scmp.eq.s32.totalorder %s26, 0
      %p235 = por %p233, %p234
      %p236 = scmp.ne.s32.totalorder %s228, %s230
      %p237 = scmp.eq.s32.totalorder %s31, 1
      %p238 = por %p236, %p237
      %p239 = scmp.ne.s32.totalorder %s230, %s231
      %p240 = scmp.eq.s32.totalorder %s31, 0
      %p241 = por %p239, %p240
      %p242 = scmp.ne.s32.totalorder %s230, %s231
      %p243 = scmp.eq.s32.totalorder %s32, 1
      %p244 = por %p242, %p243
      %p246 = scmp.ne.s32.totalorder %s231, %s245
      %p247 = scmp.eq.s32.totalorder %s32, 0
      %p248 = por %p246, %p247
      %s250 = sadd.s32 %s249, 1
      %p253 = scmp.eq.s32.totalorder %s26, 1
      %p254 = scmp.ne.s32.totalorder %s249, %s251
      %p255 = scmp.eq.s32.totalorder %s26, 0
      %p256 = por %p254, %p255
      %p257 = scmp.ne.s32.totalorder %s249, %s251
      %p258 = scmp.eq.s32.totalorder %s31, 1
      %p259 = por %p257, %p258
      %p260 = scmp.ne.s32.totalorder %s251, %s252
      %p261 = scmp.eq.s32.totalorder %s31, 0
      %p262 = por %p260, %p261
      %p263 = scmp.ne.s32.totalorder %s251, %s252
      %p264 = scmp.eq.s32.totalorder %s32, 1
      %p265 = por %p263, %p264
      %p267 = scmp.ne.s32.totalorder %s252, %s266
      %p268 = scmp.eq.s32.totalorder %s32, 0
      %p269 = por %p267, %p268
      %s271 = sadd.s32 %s270, 1
      %p274 = scmp.eq.s32.totalorder %s26, 1
      %p275 = scmp.ne.s32.totalorder %s270, %s272
      %p276 = scmp.eq.s32.totalorder %s26, 0
      %p277 = por %p275, %p276
      %p278 = scmp.ne.s32.totalorder %s270, %s272
      %p279 = scmp.eq.s32.totalorder %s31, 1
      %p280 = por %p278, %p279
      %p281 = scmp.ne.s32.totalorder %s272, %s273
      %p282 = scmp.eq.s32.totalorder %s31, 0
      %p283 = por %p281, %p282
      %p284 = scmp.ne.s32.totalorder %s272, %s273
      %p285 = scmp.eq.s32.totalorder %s32, 1
      %p286 = por %p284, %p285
      %p288 = scmp.ne.s32.totalorder %s273, %s287
      %p289 = scmp.eq.s32.totalorder %s32, 0
      %p290 = por %p288, %p289
      %s291 = ssub.s32 %s26, %s33
      %p292 = scmp.eq.s32.totalorder %s291, 0
      %s294 = sadd.s32 %s293, 1
      %s295 = scalar_select %p292, %s293, %s294
      %p298 = pneg %p292
      %p299 = scmp.eq.s32.totalorder %s26, 1
      %p300 = por %p298, %p299
      %p301 = scmp.ne.s32.totalorder %s293, %s296
      %p302 = scmp.eq.s32.totalorder %s26, 0
      %p303 = por %p301, %p302
      %p304 = scmp.ne.s32.totalorder %s293, %s296
      %p305 = scmp.eq.s32.totalorder %s31, 1
      %p306 = por %p304, %p305
      %p307 = scmp.ne.s32.totalorder %s296, %s297
      %p308 = scmp.eq.s32.totalorder %s31, 0
      %p309 = por %p307, %p308
      %p310 = scmp.ne.s32.totalorder %s296, %s297
      %p311 = scmp.eq.s32.totalorder %s32, 1
      %p312 = por %p310, %p311
      %p314 = scmp.ne.s32.totalorder %s297, %s313
      %p315 = scmp.eq.s32.totalorder %s32, 0
      %p316 = por %p314, %p315
      %s317 = ssub.s32 %s26, %s33
      %p318 = scmp.eq.s32.totalorder %s317, 0
      %s320 = sadd.s32 %s319, 1
      %s321 = scalar_select %p318, %s319, %s320
      %p324 = pneg %p318
      %p325 = scmp.eq.s32.totalorder %s26, 1
      %p326 = por %p324, %p325
      %p327 = scmp.ne.s32.totalorder %s319, %s322
      %p328 = scmp.eq.s32.totalorder %s26, 0
      %p329 = por %p327, %p328
      %p330 = scmp.ne.s32.totalorder %s319, %s322
      %p331 = scmp.eq.s32.totalorder %s31, 1
      %p332 = por %p330, %p331
      %p333 = scmp.ne.s32.totalorder %s322, %s323
      %p334 = scmp.eq.s32.totalorder %s31, 0
      %p335 = por %p333, %p334
      %p336 = scmp.ne.s32.totalorder %s322, %s323
      %p337 = scmp.eq.s32.totalorder %s32, 1
      %p338 = por %p336, %p337
      %p340 = scmp.ne.s32.totalorder %s323, %s339
      %p341 = scmp.eq.s32.totalorder %s32, 0
      %p342 = por %p340, %p341
      %p343 = scmp.le.s32.totalorder 1, %s26
      %p344 = scmp.lt.s32.totalorder %s26, 3
      %p345 = pnand %p343, %p344
      %p346 = pneg %p345
      // Predicated region
      $region9: #{tpu_custom_call.1} parent=5 // pred_check
        _
      $region10: #{tpu_custom_call.1} parent=5 // pred_check_branch
        %348 = sbr.rel (%p345) target = $region12
      $region11: #{tpu_custom_call.1} parent=5 // pred_region
        %s349 = ssub.s32 %s26, 1
        // Predicated region
        $region13: #{tpu_custom_call.1} parent=11 // pred_check
          %p350 = pneg %p73
        $region14: #{tpu_custom_call.1} parent=11 // pred_check_branch
          %352 = sbr.rel (%p350) target = $region16
        $region15: #{tpu_custom_call.1} parent=11 // pred_region
          _
        $region16: #{tpu_custom_call.1} parent=11 // pred_fallthru
          _
        // Predicated region
        $region17: #{tpu_custom_call.1} parent=11 // pred_check
          %p353 = pneg %p94
        $region18: #{tpu_custom_call.1} parent=11 // pred_check_branch
          %355 = sbr.rel (%p353) target = $region20
        $region19: #{tpu_custom_call.1} parent=11 // pred_region
          _
        $region20: #{tpu_custom_call.1} parent=11 // pred_fallthru
          _
        // Predicated region
        $region21: #{tpu_custom_call.1} parent=11 // pred_check
          %p356 = pneg %p115
        $region22: #{tpu_custom_call.1} parent=11 // pred_check_branch
          %358 = sbr.rel (%p356) target = $region24
        $region23: #{tpu_custom_call.1} parent=11 // pred_region
          _
        $region24: #{tpu_custom_call.1} parent=11 // pred_fallthru
          _
        // Predicated region
        $region25: #{tpu_custom_call.1} parent=11 // pred_check
          %p359 = pneg %p136
        $region26: #{tpu_custom_call.1} parent=11 // pred_check_branch
          %361 = sbr.rel (%p359) target = $region28
        $region27: #{tpu_custom_call.1} parent=11 // pred_region
          _
        $region28: #{tpu_custom_call.1} parent=11 // pred_fallthru
          _
        // Predicated region
        $region29: #{tpu_custom_call.1} parent=11 // pred_check
          %p362 = pneg %p157
        $region30: #{tpu_custom_call.1} parent=11 // pred_check_branch
          %364 = sbr.rel (%p362) target = $region32
        $region31: #{tpu_custom_call.1} parent=11 // pred_region
          _
        $region32: #{tpu_custom_call.1} parent=11 // pred_fallthru
          _
        // Predicated region
        $region33: #{tpu_custom_call.1} parent=11 // pred_check
          %p365 = pneg %p178
        $region34: #{tpu_custom_call.1} parent=11 // pred_check_branch
          %367 = sbr.rel (%p365) target = $region36
        $region35: #{tpu_custom_call.1} parent=11 // pred_region
          _
        $region36: #{tpu_custom_call.1} parent=11 // pred_fallthru
          _
        // Predicated region
        $region37: #{tpu_custom_call.1} parent=11 // pred_check
          %p368 = pneg %p199
        $region38: #{tpu_custom_call.1} parent=11 // pred_check_branch
          %370 = sbr.rel (%p368) target = $region40
        $region39: #{tpu_custom_call.1} parent=11 // pred_region
          _
        $region40: #{tpu_custom_call.1} parent=11 // pred_fallthru
          _
        // Predicated region
        $region41: #{tpu_custom_call.1} parent=11 // pred_check
          %p371 = pneg %p220
        $region42: #{tpu_custom_call.1} parent=11 // pred_check_branch
          %373 = sbr.rel (%p371) target = $region44
        $region43: #{tpu_custom_call.1} parent=11 // pred_region
          _
        $region44: #{tpu_custom_call.1} parent=11 // pred_fallthru
          _
        // Predicated region
        $region45: #{tpu_custom_call.1} parent=11 // pred_check
          %p374 = pneg %p241
        $region46: #{tpu_custom_call.1} parent=11 // pred_check_branch
          %376 = sbr.rel (%p374) target = $region48
        $region47: #{tpu_custom_call.1} parent=11 // pred_region
          _
        $region48: #{tpu_custom_call.1} parent=11 // pred_fallthru
          _
        // Predicated region
        $region49: #{tpu_custom_call.1} parent=11 // pred_check
          %p377 = pneg %p262
        $region50: #{tpu_custom_call.1} parent=11 // pred_check_branch
          %379 = sbr.rel (%p377) target = $region52
        $region51: #{tpu_custom_call.1} parent=11 // pred_region
          _
        $region52: #{tpu_custom_call.1} parent=11 // pred_fallthru
          _
        // Predicated region
        $region53: #{tpu_custom_call.1} parent=11 // pred_check
          %p380 = pneg %p283
        $region54: #{tpu_custom_call.1} parent=11 // pred_check_branch
          %382 = sbr.rel (%p380) target = $region56
        $region55: #{tpu_custom_call.1} parent=11 // pred_region
          _
        $region56: #{tpu_custom_call.1} parent=11 // pred_fallthru
          _
      $region12: #{tpu_custom_call.1} parent=5 // pred_fallthru
        _
      %p383 = scmp.lt.s32.totalorder %s26, 2
      // Predicated region
      $region57: #{tpu_custom_call.1} parent=5 // pred_check
        %p384 = pneg %p383
      $region58: #{tpu_custom_call.1} parent=5 // pred_check_branch
        %386 = sbr.rel (%p384) target = $region60
      $region59: #{tpu_custom_call.1} parent=5 // pred_region
        // Predicated region
        $region61: #{tpu_custom_call.1} parent=59 // pred_check
          %p387 = pneg %p46
        $region62: #{tpu_custom_call.1} parent=59 // pred_check_branch
          %389 = sbr.rel (%p387) target = $region64
        $region63: #{tpu_custom_call.1} parent=59 // pred_region
          %p390 = scmp.lt.s32.totalorder %s26, 1
          %s391 = scalar_select %p390, %s26, 1
          %s392 = smul.addr %s391, 8
          %s393 = scalar_lea.vmem %s0, %s392
        $region64: #{tpu_custom_call.1} parent=59 // pred_fallthru
          _
      $region60: #{tpu_custom_call.1} parent=5 // pred_fallthru
        _
      %p394 = scmp.le.s32.totalorder 1, %s26
      %p395 = scmp.lt.s32.totalorder %s26, 3
      %p396 = pnand %p394, %p395
      %p397 = pneg %p396
      // Predicated region
      $region65: #{tpu_custom_call.1} parent=5 // pred_check
        _
      $region66: #{tpu_custom_call.1} parent=5 // pred_check_branch
        %399 = sbr.rel (%p396) target = $region68
      $region67: #{tpu_custom_call.1} parent=5 // pred_region
        %s400 = ssub.s32 %s26, 1
        %p401 = scmp.lt.s32.totalorder %s31, 1
        %s402 = scalar_select %p401, %s31, 1
        %s403 = smul.addr %s402, 8
        %s404 = scalar_lea.vmem %s0, %s403
        %p405 = pneg %p52
        %p406 = pneg %p49
        %p407 = pneg %p73
        %p408 = pneg %p70
        %p409 = pneg %p94
        %p410 = pneg %p91
        %p411 = pneg %p115
        %p412 = pneg %p112
        %p413 = pneg %p136
        %p414 = pneg %p133
        %p415 = pneg %p157
        %p416 = pneg %p154
        %p417 = pneg %p178
        %p418 = pneg %p175
        %p419 = pneg %p199
        %p420 = pneg %p196
        %p421 = pneg %p220
        %p422 = pneg %p217
        %p423 = pneg %p241
        %p424 = pneg %p238
        %p425 = pneg %p262
        %p426 = pneg %p259
        %p427 = pneg %p283
        %p428 = pneg %p280
        %p429 = pneg %p309
        %p430 = pneg %p306
        %s431 = sand.u32 %s296, 1
        %s432 = scalar_lea.sflag [#allocation3], %s431
        %s433 = sand.u32 %s296, 1
        %s434 = smul.addr %s433, 8
        %s435 = scalar_lea.vmem [#allocation2], %s434
        %p436 = pneg %p335
        %p437 = pneg %p332
        %s438 = sand.u32 %s322, 1
        %s439 = scalar_lea.sflag [#allocation5], %s438
        %s440 = sand.u32 %s322, 1
        %s441 = smul.addr %s440, 8
        %s442 = scalar_lea.vmem [#allocation4], %s441
        %p443 = scmp.lt.s32.totalorder %s31, 1
        %s444 = scalar_select %p443, %s31, 1
        %s445 = smul.addr %s444, 8
        %s446 = scalar_lea.vmem %s0, %s445
        %v447 = vld [vmem:[%s446] sm:$0xff]
        %v448 = vld [vmem:[%s1] sm:$0x1]
        %v449 = vld [vmem:[%s2] sm:$0x1]
        %vm450 = vcmask 261120
        %v451 = vsel %vm450, %v447, 0.0
        %452 = vadd.xlane.f32.xlu0 %v451
        %v453 = vpop.xlane.xlu0 %452
        %v454 = vrcp.pop 32.0
        %v455 = vmul.f32 %v453, %v454
        %v456 = vsub.f32 %v447, %v455
        %v457 = vmul.f32 %v456, %v456
        %v458 = vsel %vm450, %v457, 0.0
        %459 = vadd.xlane.f32.xlu0 %v458
        %v460 = vpop.xlane.xlu0 %459
        %v461 = vmul.f32 %v460, %v454
        %v462 = vadd.f32 %v461, 1e-05
        %v463 = vrsqrt.pop %v462
        %v464 = vmul.f32 %v456, %v463
        %v466 = vlaneseq
        %v467 = vshrl.u32 %v466, 7
        %v468 = vsub.s32 0, %v467
        %v469 = vrot.slane %v448, %v468
        %v471 = vmul.f32 %v464, %v469
        %v473 = vlaneseq
        %v474 = vshrl.u32 %v473, 7
        %v475 = vsub.s32 0, %v474
        %v476 = vrot.slane %v449, %v475
        %v478 = vadd.f32 %v471, %v476
        %v479 = vld [vmem:[%s3] sm:$0xff]
        %v480 = vld [vmem:[%s3 + $0x8] sm:$0xff]
        %v481 = vld [vmem:[%s3 + $0x10] sm:$0xff]
        %v482 = vld [vmem:[%s3 + $0x18] sm:$0xff]
        %v484 = vsel %vm450, %v478, 0
        %486 = vmatprep.subr.mxu0 0.0
        %487 = vmatpush1.msra.mxu0 0.0
        %488 = vmatprep.subr.mxu0 0.0
        %489 = vmatpush1.msra.mxu0 0.0
        %490 = vmatprep.subr.mxu0 0.0
        %491 = vmatpush1.msra.mxu0 0.0
        %492 = vmatprep.subr.mxu0 0.0
        %493 = vmatpush1.msra.mxu0 0.0
        %494 = vmatprep.subr.mxu0 0.0
        %495 = vmatpush1.msra.mxu0 0.0
        %496 = vmatprep.subr.mxu0 0.0
        %497 = vmatpush1.msra.mxu0 0.0
        %498 = vmatprep.subr.mxu0 0.0
        %499 = vmatpush1.msra.mxu0 0.0
        %500 = vmatprep.subr.mxu0 0.0
        %501 = vmatpush1.msra.mxu0 0.0
        %502 = vmatprep.subr.mxu0 0.0
        %503 = vmatpush1.msra.mxu0 0.0
        %504 = vmatprep.subr.mxu0 0.0
        %505 = vmatpush1.msra.mxu0 0.0
        %506 = vmatprep.subr.mxu0 0.0
        %507 = vmatpush1.msra.mxu0 0.0
        %508 = vmatprep.subr.mxu0 0.0
        %509 = vmatpush1.msra.mxu0 0.0
        %510 = vmatprep.subr.mxu0 0.0
        %511 = vmatpush1.msra.mxu0 %v482
        %512 = vmatprep.subr.mxu0 0.0
        %513 = vmatpush1.msra.mxu0 %v481
        %514 = vmatprep.subr.mxu0 0.0
        %515 = vmatpush1.msra.mxu0 %v480
        %516 = vmatprep.subr.mxu0 0.0
        %517 = vmatpush1.msra.mxu0 %v479
        %518 = vmatprep.subr.mxu0 0.0
        %519 = vmatpush2.msra.mxu0 0.0
        %520 = vmatprep.subr.mxu0 0.0
        %521 = vmatpush2.msra.mxu0 0.0
        %522 = vmatprep.subr.mxu0 0.0
        %523 = vmatpush2.msra.mxu0 0.0
        %524 = vmatprep.subr.mxu0 0.0
        %525 = vmatpush2.msra.mxu0 0.0
        %526 = vmatprep.subr.mxu0 0.0
        %527 = vmatpush2.msra.mxu0 0.0
        %528 = vmatprep.subr.mxu0 0.0
        %529 = vmatpush2.msra.mxu0 0.0
        %530 = vmatprep.subr.mxu0 0.0
        %531 = vmatpush2.msra.mxu0 0.0
        %532 = vmatprep.subr.mxu0 0.0
        %533 = vmatpush2.msra.mxu0 0.0
        %534 = vmatprep.subr.mxu0 0.0
        %535 = vmatpush2.msra.mxu0 0.0
        %536 = vmatprep.subr.mxu0 0.0
        %537 = vmatpush2.msra.mxu0 0.0
        %538 = vmatprep.subr.mxu0 0.0
        %539 = vmatpush2.msra.mxu0 0.0
        %540 = vmatprep.subr.mxu0 0.0
        %541 = vmatpush2.msra.mxu0 0.0
        %542 = vmatprep.subr.mxu0 0.0
        %543 = vmatpush2.msra.mxu0 0.0
        %544 = vmatprep.subr.mxu0 0.0
        %545 = vmatpush2.msra.mxu0 0.0
        %546 = vmatprep.subr.mxu0 0.0
        %547 = vmatpush2.msra.mxu0 0.0
        %548 = vmatprep.subr.mxu0 0.0
        %549 = vmatpush2.msra.mxu0 0.0
        %550 = vmatprep.mubr.f32.mxu0 0.0
        %551 = vmatmul.mubr.f32.gmra.mxu0 %v484
        %v552 = vpop.f32.mrf.mxu0
        %v553 = vadd.f32 0.0, %v552
        %v554 = vpop.f32.mrf.mxu0
        %555 = vdwg.mxu0
        %557 = vrot.lane.b32.xlu0 %v553, 120
        %v558 = vpop.permute.xlu0 %557
        %560 = vrot.lane.b32.xlu0 %v553, 112
        %v561 = vpop.permute.xlu0 %560
        %563 = vrot.lane.b32.xlu0 %v553, 104
        %v564 = vpop.permute.xlu0 %563
        %v566 = vcombine.low %v553, %v561
        %v567 = vcombine.high %v553, %v561
        %v569 = vunpack.c.l.s4 1983009808
        %v570 = vunpack.c.0.s8 %v569
        %v571 = vlaneseq
        %v572 = vshrl.u32 %v571, 7
        %v573 = vsub.s32 %v570, %v572
        %v574 = vrot.slane %v566, %v573
        %v576 = vunpack.c.l.s4 1983009808
        %v577 = vunpack.c.0.s8 %v576
        %v578 = vlaneseq
        %v579 = vshrl.u32 %v578, 7
        %v580 = vsub.s32 %v577, %v579
        %v581 = vrot.slane %v567, %v580
        %v582 = vcombine.low %v558, %v564
        %v583 = vcombine.high %v558, %v564
        %v585 = vunpack.c.l.s4 1983009808
        %v586 = vunpack.c.0.s8 %v585
        %v587 = vlaneseq
        %v588 = vshrl.u32 %v587, 7
        %v589 = vsub.s32 %v586, %v588
        %v590 = vrot.slane %v582, %v589
        %v592 = vunpack.c.l.s4 1983009808
        %v593 = vunpack.c.0.s8 %v592
        %v594 = vlaneseq
        %v595 = vshrl.u32 %v594, 7
        %v596 = vsub.s32 %v593, %v595
        %v597 = vrot.slane %v583, %v596
        %v598 = vcombine.low %v574, %v590
        %v599 = vcombine.high %v574, %v590
        %v601 = vunpack.c.l.s4 1934713408
        %v602 = vunpack.c.0.s8 %v601
        %v603 = vlaneseq
        %v604 = vshrl.u32 %v603, 7
        %v605 = vsub.s32 %v602, %v604
        %v606 = vrot.slane %v598, %v605
        %v608 = vunpack.c.l.s4 1934713408
        %v609 = vunpack.c.0.s8 %v608
        %v610 = vlaneseq
        %v611 = vshrl.u32 %v610, 7
        %v612 = vsub.s32 %v609, %v611
        %v613 = vrot.slane %v599, %v612
        %v614 = vcombine.low %v581, %v597
        %v615 = vcombine.high %v581, %v597
        %v617 = vunpack.c.l.s4 1934713408
        %v618 = vunpack.c.0.s8 %v617
        %v619 = vlaneseq
        %v620 = vshrl.u32 %v619, 7
        %v621 = vsub.s32 %v618, %v620
        %v622 = vrot.slane %v614, %v621
        %v624 = vunpack.c.l.s4 1934713408
        %v625 = vunpack.c.0.s8 %v624
        %v626 = vlaneseq
        %v627 = vshrl.u32 %v626, 7
        %v628 = vsub.s32 %v625, %v627
        %v629 = vrot.slane %v615, %v628
        %v630 = vcombine.high %v606, 0.0
        %v631 = vcombine.high %v613, 0.0
        %v632 = vcombine.high %v622, 0.0
        %v633 = vcombine.high %v629, 0.0
        %v634 = vcombine.low %v606, %v613
        %v636 = vunpack.c.l.s4 1983009808
        %v637 = vunpack.c.0.s8 %v636
        %v638 = vlaneseq
        %v639 = vshrl.u32 %v638, 7
        %v640 = vsub.s32 %v637, %v639
        %v641 = vrot.slane %v634, %v640
        %v642 = vcombine.low %v630, %v631
        %v644 = vunpack.c.l.s4 1983009808
        %v645 = vunpack.c.0.s8 %v644
        %v646 = vlaneseq
        %v647 = vshrl.u32 %v646, 7
        %v648 = vsub.s32 %v645, %v647
        %v649 = vrot.slane %v642, %v648
        %v650 = vcombine.low %v622, %v629
        %v652 = vunpack.c.l.s4 1983009808
        %v653 = vunpack.c.0.s8 %v652
        %v654 = vlaneseq
        %v655 = vshrl.u32 %v654, 7
        %v656 = vsub.s32 %v653, %v655
        %v657 = vrot.slane %v650, %v656
        %v658 = vcombine.low %v632, %v633
        %v660 = vunpack.c.l.s4 1983009808
        %v661 = vunpack.c.0.s8 %v660
        %v662 = vlaneseq
        %v663 = vshrl.u32 %v662, 7
        %v664 = vsub.s32 %v661, %v663
        %v665 = vrot.slane %v658, %v664
        %v666 = vcombine.low %v641, %v649
        %v667 = vcombine.high %v641, %v649
        %v669 = vunpack.c.l.s4 1934713408
        %v670 = vunpack.c.0.s8 %v669
        %v671 = vlaneseq
        %v672 = vshrl.u32 %v671, 7
        %v673 = vsub.s32 %v670, %v672
        %v674 = vrot.slane %v666, %v673
        %v676 = vunpack.c.l.s4 1934713408
        %v677 = vunpack.c.0.s8 %v676
        %v678 = vlaneseq
        %v679 = vshrl.u32 %v678, 7
        %v680 = vsub.s32 %v677, %v679
        %v681 = vrot.slane %v667, %v680
        %v682 = vcombine.low %v657, %v665
        %v683 = vcombine.high %v657, %v665
        %v685 = vunpack.c.l.s4 1934713408
        %v686 = vunpack.c.0.s8 %v685
        %v687 = vlaneseq
        %v688 = vshrl.u32 %v687, 7
        %v689 = vsub.s32 %v686, %v688
        %v690 = vrot.slane %v682, %v689
        %v692 = vunpack.c.l.s4 1934713408
        %v693 = vunpack.c.0.s8 %v692
        %v694 = vlaneseq
        %v695 = vshrl.u32 %v694, 7
        %v696 = vsub.s32 %v693, %v695
        %v697 = vrot.slane %v683, %v696
        %v698 = vcombine.low %v674, %v690
        %v699 = vcombine.high %v674, %v690
        %v700 = vcombine.low %v681, %v697
        %v701 = vcombine.high %v681, %v697
        %702 = vrot.lane.b32.xlu0 %v553, 96
        %v703 = vpop.permute.xlu0 %702
        %704 = vrot.lane.b32.xlu0 %v558, 96
        %v705 = vpop.permute.xlu0 %704
        %706 = vrot.lane.b32.xlu0 %v561, 96
        %v707 = vpop.permute.xlu0 %706
        %708 = vrot.lane.b32.xlu0 %v564, 96
        %v709 = vpop.permute.xlu0 %708
        %v714 = vcombine.low %v703, %v707
        %v715 = vcombine.high %v703, %v707
        %v717 = vunpack.c.l.s4 1983009808
        %v718 = vunpack.c.0.s8 %v717
        %v719 = vlaneseq
        %v720 = vshrl.u32 %v719, 7
        %v721 = vsub.s32 %v718, %v720
        %v722 = vrot.slane %v714, %v721
        %v724 = vunpack.c.l.s4 1983009808
        %v725 = vunpack.c.0.s8 %v724
        %v726 = vlaneseq
        %v727 = vshrl.u32 %v726, 7
        %v728 = vsub.s32 %v725, %v727
        %v729 = vrot.slane %v715, %v728
        %v730 = vcombine.low %v705, %v709
        %v731 = vcombine.high %v705, %v709
        %v733 = vunpack.c.l.s4 1983009808
        %v734 = vunpack.c.0.s8 %v733
        %v735 = vlaneseq
        %v736 = vshrl.u32 %v735, 7
        %v737 = vsub.s32 %v734, %v736
        %v738 = vrot.slane %v730, %v737
        %v740 = vunpack.c.l.s4 1983009808
        %v741 = vunpack.c.0.s8 %v740
        %v742 = vlaneseq
        %v743 = vshrl.u32 %v742, 7
        %v744 = vsub.s32 %v741, %v743
        %v745 = vrot.slane %v731, %v744
        %v746 = vcombine.low %v722, %v738
        %v747 = vcombine.high %v722, %v738
        %v749 = vunpack.c.l.s4 1934713408
        %v750 = vunpack.c.0.s8 %v749
        %v751 = vlaneseq
        %v752 = vshrl.u32 %v751, 7
        %v753 = vsub.s32 %v750, %v752
        %v754 = vrot.slane %v746, %v753
        %v756 = vunpack.c.l.s4 1934713408
        %v757 = vunpack.c.0.s8 %v756
        %v758 = vlaneseq
        %v759 = vshrl.u32 %v758, 7
        %v760 = vsub.s32 %v757, %v759
        %v761 = vrot.slane %v747, %v760
        %v762 = vcombine.low %v729, %v745
        %v763 = vcombine.high %v729, %v745
        %v765 = vunpack.c.l.s4 1934713408
        %v766 = vunpack.c.0.s8 %v765
        %v767 = vlaneseq
        %v768 = vshrl.u32 %v767, 7
        %v769 = vsub.s32 %v766, %v768
        %v770 = vrot.slane %v762, %v769
        %v772 = vunpack.c.l.s4 1934713408
        %v773 = vunpack.c.0.s8 %v772
        %v774 = vlaneseq
        %v775 = vshrl.u32 %v774, 7
        %v776 = vsub.s32 %v773, %v775
        %v777 = vrot.slane %v763, %v776
        %v778 = vcombine.high %v754, 0.0
        %v779 = vcombine.high %v761, 0.0
        %v780 = vcombine.high %v770, 0.0
        %v781 = vcombine.high %v777, 0.0
        %v782 = vcombine.low %v754, %v761
        %v784 = vunpack.c.l.s4 1983009808
        %v785 = vunpack.c.0.s8 %v784
        %v786 = vlaneseq
        %v787 = vshrl.u32 %v786, 7
        %v788 = vsub.s32 %v785, %v787
        %v789 = vrot.slane %v782, %v788
        %v790 = vcombine.low %v778, %v779
        %v792 = vunpack.c.l.s4 1983009808
        %v793 = vunpack.c.0.s8 %v792
        %v794 = vlaneseq
        %v795 = vshrl.u32 %v794, 7
        %v796 = vsub.s32 %v793, %v795
        %v797 = vrot.slane %v790, %v796
        %v798 = vcombine.low %v770, %v777
        %v800 = vunpack.c.l.s4 1983009808
        %v801 = vunpack.c.0.s8 %v800
        %v802 = vlaneseq
        %v803 = vshrl.u32 %v802, 7
        %v804 = vsub.s32 %v801, %v803
        %v805 = vrot.slane %v798, %v804
        %v806 = vcombine.low %v780, %v781
        %v808 = vunpack.c.l.s4 1983009808
        %v809 = vunpack.c.0.s8 %v808
        %v810 = vlaneseq
        %v811 = vshrl.u32 %v810, 7
        %v812 = vsub.s32 %v809, %v811
        %v813 = vrot.slane %v806, %v812
        %v814 = vcombine.low %v789, %v797
        %v815 = vcombine.high %v789, %v797
        %v817 = vunpack.c.l.s4 1934713408
        %v818 = vunpack.c.0.s8 %v817
        %v819 = vlaneseq
        %v820 = vshrl.u32 %v819, 7
        %v821 = vsub.s32 %v818, %v820
        %v822 = vrot.slane %v814, %v821
        %v824 = vunpack.c.l.s4 1934713408
        %v825 = vunpack.c.0.s8 %v824
        %v826 = vlaneseq
        %v827 = vshrl.u32 %v826, 7
        %v828 = vsub.s32 %v825, %v827
        %v829 = vrot.slane %v815, %v828
        %v830 = vcombine.low %v805, %v813
        %v831 = vcombine.high %v805, %v813
        %v833 = vunpack.c.l.s4 1934713408
        %v834 = vunpack.c.0.s8 %v833
        %v835 = vlaneseq
        %v836 = vshrl.u32 %v835, 7
        %v837 = vsub.s32 %v834, %v836
        %v838 = vrot.slane %v830, %v837
        %v840 = vunpack.c.l.s4 1934713408
        %v841 = vunpack.c.0.s8 %v840
        %v842 = vlaneseq
        %v843 = vshrl.u32 %v842, 7
        %v844 = vsub.s32 %v841, %v843
        %v845 = vrot.slane %v831, %v844
        %v846 = vcombine.low %v822, %v838
        %v847 = vcombine.high %v822, %v838
        %v848 = vcombine.low %v829, %v845
        %v849 = vcombine.high %v829, %v845
        %850 = vrot.lane.b32.xlu0 %v553, 64
        %v851 = vpop.permute.xlu0 %850
        %852 = vrot.lane.b32.xlu0 %v558, 64
        %v853 = vpop.permute.xlu0 %852
        %854 = vrot.lane.b32.xlu0 %v561, 64
        %v855 = vpop.permute.xlu0 %854
        %856 = vrot.lane.b32.xlu0 %v564, 64
        %v857 = vpop.permute.xlu0 %856
        %v862 = vcombine.low %v851, %v855
        %v863 = vcombine.high %v851, %v855
        %v865 = vunpack.c.l.s4 1983009808
        %v866 = vunpack.c.0.s8 %v865
        %v867 = vlaneseq
        %v868 = vshrl.u32 %v867, 7
        %v869 = vsub.s32 %v866, %v868
        %v870 = vrot.slane %v862, %v869
        %v872 = vunpack.c.l.s4 1983009808
        %v873 = vunpack.c.0.s8 %v872
        %v874 = vlaneseq
        %v875 = vshrl.u32 %v874, 7
        %v876 = vsub.s32 %v873, %v875
        %v877 = vrot.slane %v863, %v876
        %v878 = vcombine.low %v853, %v857
        %v879 = vcombine.high %v853, %v857
        %v881 = vunpack.c.l.s4 1983009808
        %v882 = vunpack.c.0.s8 %v881
        %v883 = vlaneseq
        %v884 = vshrl.u32 %v883, 7
        %v885 = vsub.s32 %v882, %v884
        %v886 = vrot.slane %v878, %v885
        %v888 = vunpack.c.l.s4 1983009808
        %v889 = vunpack.c.0.s8 %v888
        %v890 = vlaneseq
        %v891 = vshrl.u32 %v890, 7
        %v892 = vsub.s32 %v889, %v891
        %v893 = vrot.slane %v879, %v892
        %v894 = vcombine.low %v870, %v886
        %v895 = vcombine.high %v870, %v886
        %v897 = vunpack.c.l.s4 1934713408
        %v898 = vunpack.c.0.s8 %v897
        %v899 = vlaneseq
        %v900 = vshrl.u32 %v899, 7
        %v901 = vsub.s32 %v898, %v900
        %v902 = vrot.slane %v894, %v901
        %v904 = vunpack.c.l.s4 1934713408
        %v905 = vunpack.c.0.s8 %v904
        %v906 = vlaneseq
        %v907 = vshrl.u32 %v906, 7
        %v908 = vsub.s32 %v905, %v907
        %v909 = vrot.slane %v895, %v908
        %v910 = vcombine.low %v877, %v893
        %v911 = vcombine.high %v877, %v893
        %v913 = vunpack.c.l.s4 1934713408
        %v914 = vunpack.c.0.s8 %v913
        %v915 = vlaneseq
        %v916 = vshrl.u32 %v915, 7
        %v917 = vsub.s32 %v914, %v916
        %v918 = vrot.slane %v910, %v917
        %v920 = vunpack.c.l.s4 1934713408
        %v921 = vunpack.c.0.s8 %v920
        %v922 = vlaneseq
        %v923 = vshrl.u32 %v922, 7
        %v924 = vsub.s32 %v921, %v923
        %v925 = vrot.slane %v911, %v924
        %v926 = vcombine.high %v902, 0.0
        %v927 = vcombine.high %v909, 0.0
        %v928 = vcombine.high %v918, 0.0
        %v929 = vcombine.high %v925, 0.0
        %v930 = vcombine.low %v902, %v909
        %v932 = vunpack.c.l.s4 1983009808
        %v933 = vunpack.c.0.s8 %v932
        %v934 = vlaneseq
        %v935 = vshrl.u32 %v934, 7
        %v936 = vsub.s32 %v933, %v935
        %v937 = vrot.slane %v930, %v936
        %v938 = vcombine.low %v926, %v927
        %v940 = vunpack.c.l.s4 1983009808
        %v941 = vunpack.c.0.s8 %v940
        %v942 = vlaneseq
        %v943 = vshrl.u32 %v942, 7
        %v944 = vsub.s32 %v941, %v943
        %v945 = vrot.slane %v938, %v944
        %v946 = vcombine.low %v918, %v925
        %v948 = vunpack.c.l.s4 1983009808
        %v949 = vunpack.c.0.s8 %v948
        %v950 = vlaneseq
        %v951 = vshrl.u32 %v950, 7
        %v952 = vsub.s32 %v949, %v951
        %v953 = vrot.slane %v946, %v952
        %v954 = vcombine.low %v928, %v929
        %v956 = vunpack.c.l.s4 1983009808
        %v957 = vunpack.c.0.s8 %v956
        %v958 = vlaneseq
        %v959 = vshrl.u32 %v958, 7
        %v960 = vsub.s32 %v957, %v959
        %v961 = vrot.slane %v954, %v960
        %v962 = vcombine.low %v937, %v945
        %v963 = vcombine.high %v937, %v945
        %v965 = vunpack.c.l.s4 1934713408
        %v966 = vunpack.c.0.s8 %v965
        %v967 = vlaneseq
        %v968 = vshrl.u32 %v967, 7
        %v969 = vsub.s32 %v966, %v968
        %v970 = vrot.slane %v962, %v969
        %v972 = vunpack.c.l.s4 1934713408
        %v973 = vunpack.c.0.s8 %v972
        %v974 = vlaneseq
        %v975 = vshrl.u32 %v974, 7
        %v976 = vsub.s32 %v973, %v975
        %v977 = vrot.slane %v963, %v976
        %v978 = vcombine.low %v953, %v961
        %v979 = vcombine.high %v953, %v961
        %v981 = vunpack.c.l.s4 1934713408
        %v982 = vunpack.c.0.s8 %v981
        %v983 = vlaneseq
        %v984 = vshrl.u32 %v983, 7
        %v985 = vsub.s32 %v982, %v984
        %v986 = vrot.slane %v978, %v985
        %v988 = vunpack.c.l.s4 1934713408
        %v989 = vunpack.c.0.s8 %v988
        %v990 = vlaneseq
        %v991 = vshrl.u32 %v990, 7
        %v992 = vsub.s32 %v989, %v991
        %v993 = vrot.slane %v979, %v992
        %v994 = vcombine.low %v970, %v986
        %v995 = vcombine.high %v970, %v986
        %v996 = vcombine.low %v977, %v993
        %v997 = vcombine.high %v977, %v993
        %vm998 = vcmask 64512
        %v1000 = vsel %vm998, %v698, 0
        %v1003 = vsel %vm998, %v846, 0
        %1005 = vmatprep.subr.mxu0 0.0
        %1006 = vmatpush1.xpose.msra.mxu0 0.0
        %1007 = vmatprep.subr.mxu0 0.0
        %1008 = vmatpush1.xpose.msra.mxu0 0.0
        %1009 = vmatprep.subr.mxu0 0.0
        %1010 = vmatpush1.xpose.msra.mxu0 0.0
        %1011 = vmatprep.subr.mxu0 0.0
        %1012 = vmatpush1.xpose.msra.mxu0 0.0
        %1013 = vmatprep.subr.mxu0 0.0
        %1014 = vmatpush1.xpose.msra.mxu0 0.0
        %1015 = vmatprep.subr.mxu0 0.0
        %1016 = vmatpush1.xpose.msra.mxu0 0.0
        %1017 = vmatprep.subr.mxu0 0.0
        %1018 = vmatpush1.xpose.msra.mxu0 0.0
        %1019 = vmatprep.subr.mxu0 0.0
        %1020 = vmatpush1.xpose.msra.mxu0 0.0
        %1021 = vmatprep.subr.mxu0 0.0
        %1022 = vmatpush1.xpose.msra.mxu0 0.0
        %1023 = vmatprep.subr.mxu0 0.0
        %1024 = vmatpush1.xpose.msra.mxu0 0.0
        %1025 = vmatprep.subr.mxu0 0.0
        %1026 = vmatpush1.xpose.msra.mxu0 0.0
        %1027 = vmatprep.subr.mxu0 0.0
        %1028 = vmatpush1.xpose.msra.mxu0 0.0
        %1029 = vmatprep.subr.mxu0 0.0
        %1030 = vmatpush1.xpose.msra.mxu0 0.0
        %1031 = vmatprep.subr.mxu0 0.0
        %1032 = vmatpush1.xpose.msra.mxu0 0.0
        %1033 = vmatprep.subr.mxu0 0.0
        %1034 = vmatpush1.xpose.msra.mxu0 0.0
        %1035 = vmatprep.subr.mxu0 0.0
        %1036 = vmatpush1.xpose.msra.mxu0 %v1003
        %1037 = vmatprep.subr.mxu0 0.0
        %1038 = vmatpush2.xpose.msra.mxu0 0.0
        %1039 = vmatprep.subr.mxu0 0.0
        %1040 = vmatpush2.xpose.msra.mxu0 0.0
        %1041 = vmatprep.subr.mxu0 0.0
        %1042 = vmatpush2.xpose.msra.mxu0 0.0
        %1043 = vmatprep.subr.mxu0 0.0
        %1044 = vmatpush2.xpose.msra.mxu0 0.0
        %1045 = vmatprep.subr.mxu0 0.0
        %1046 = vmatpush2.xpose.msra.mxu0 0.0
        %1047 = vmatprep.subr.mxu0 0.0
        %1048 = vmatpush2.xpose.msra.mxu0 0.0
        %1049 = vmatprep.subr.mxu0 0.0
        %1050 = vmatpush2.xpose.msra.mxu0 0.0
        %1051 = vmatprep.subr.mxu0 0.0
        %1052 = vmatpush2.xpose.msra.mxu0 0.0
        %1053 = vmatprep.subr.mxu0 0.0
        %1054 = vmatpush2.xpose.msra.mxu0 0.0
        %1055 = vmatprep.subr.mxu0 0.0
        %1056 = vmatpush2.xpose.msra.mxu0 0.0
        %1057 = vmatprep.subr.mxu0 0.0
        %1058 = vmatpush2.xpose.msra.mxu0 0.0
        %1059 = vmatprep.subr.mxu0 0.0
        %1060 = vmatpush2.xpose.msra.mxu0 0.0
        %1061 = vmatprep.subr.mxu0 0.0
        %1062 = vmatpush2.xpose.msra.mxu0 0.0
        %1063 = vmatprep.subr.mxu0 0.0
        %1064 = vmatpush2.xpose.msra.mxu0 0.0
        %1065 = vmatprep.subr.mxu0 0.0
        %1066 = vmatpush2.xpose.msra.mxu0 0.0
        %1067 = vmatprep.subr.mxu0 0.0
        %1068 = vmatpush2.xpose.msra.mxu0 0.0
        %1069 = vmatprep.mubr.f32.mxu0 0.0
        %1070 = vmatmul.mubr.f32.gmra.mxu0 %v1000
        %v1071 = vpop.f32.mrf.mxu0
        %v1072 = vadd.f32 0.0, %v1071
        %v1073 = vpop.f32.mrf.mxu0
        %1074 = vdwg.mxu0
        %v1076 = vsel %vm998, %v699, 0
        %v1079 = vsel %vm998, %v847, 0
        %1081 = vmatprep.subr.mxu0 0.0
        %1082 = vmatpush1.xpose.msra.mxu0 0.0
        %1083 = vmatprep.subr.mxu0 0.0
        %1084 = vmatpush1.xpose.msra.mxu0 0.0
        %1085 = vmatprep.subr.mxu0 0.0
        %1086 = vmatpush1.xpose.msra.mxu0 0.0
        %1087 = vmatprep.subr.mxu0 0.0
        %1088 = vmatpush1.xpose.msra.mxu0 0.0
        %1089 = vmatprep.subr.mxu0 0.0
        %1090 = vmatpush1.xpose.msra.mxu0 0.0
        %1091 = vmatprep.subr.mxu0 0.0
        %1092 = vmatpush1.xpose.msra.mxu0 0.0
        %1093 = vmatprep.subr.mxu0 0.0
        %1094 = vmatpush1.xpose.msra.mxu0 0.0
        %1095 = vmatprep.subr.mxu0 0.0
        %1096 = vmatpush1.xpose.msra.mxu0 0.0
        %1097 = vmatprep.subr.mxu0 0.0
        %1098 = vmatpush1.xpose.msra.mxu0 0.0
        %1099 = vmatprep.subr.mxu0 0.0
        %1100 = vmatpush1.xpose.msra.mxu0 0.0
        %1101 = vmatprep.subr.mxu0 0.0
        %1102 = vmatpush1.xpose.msra.mxu0 0.0
        %1103 = vmatprep.subr.mxu0 0.0
        %1104 = vmatpush1.xpose.msra.mxu0 0.0
        %1105 = vmatprep.subr.mxu0 0.0
        %1106 = vmatpush1.xpose.msra.mxu0 0.0
        %1107 = vmatprep.subr.mxu0 0.0
        %1108 = vmatpush1.xpose.msra.mxu0 0.0
        %1109 = vmatprep.subr.mxu0 0.0
        %1110 = vmatpush1.xpose.msra.mxu0 0.0
        %1111 = vmatprep.subr.mxu0 0.0
        %1112 = vmatpush1.xpose.msra.mxu0 %v1079
        %1113 = vmatprep.subr.mxu0 0.0
        %1114 = vmatpush2.xpose.msra.mxu0 0.0
        %1115 = vmatprep.subr.mxu0 0.0
        %1116 = vmatpush2.xpose.msra.mxu0 0.0
        %1117 = vmatprep.subr.mxu0 0.0
        %1118 = vmatpush2.xpose.msra.mxu0 0.0
        %1119 = vmatprep.subr.mxu0 0.0
        %1120 = vmatpush2.xpose.msra.mxu0 0.0
        %1121 = vmatprep.subr.mxu0 0.0
        %1122 = vmatpush2.xpose.msra.mxu0 0.0
        %1123 = vmatprep.subr.mxu0 0.0
        %1124 = vmatpush2.xpose.msra.mxu0 0.0
        %1125 = vmatprep.subr.mxu0 0.0
        %1126 = vmatpush2.xpose.msra.mxu0 0.0
        %1127 = vmatprep.subr.mxu0 0.0
        %1128 = vmatpush2.xpose.msra.mxu0 0.0
        %1129 = vmatprep.subr.mxu0 0.0
        %1130 = vmatpush2.xpose.msra.mxu0 0.0
        %1131 = vmatprep.subr.mxu0 0.0
        %1132 = vmatpush2.xpose.msra.mxu0 0.0
        %1133 = vmatprep.subr.mxu0 0.0
        %1134 = vmatpush2.xpose.msra.mxu0 0.0
        %1135 = vmatprep.subr.mxu0 0.0
        %1136 = vmatpush2.xpose.msra.mxu0 0.0
        %1137 = vmatprep.subr.mxu0 0.0
        %1138 = vmatpush2.xpose.msra.mxu0 0.0
        %1139 = vmatprep.subr.mxu0 0.0
        %1140 = vmatpush2.xpose.msra.mxu0 0.0
        %1141 = vmatprep.subr.mxu0 0.0
        %1142 = vmatpush2.xpose.msra.mxu0 0.0
        %1143 = vmatprep.subr.mxu0 0.0
        %1144 = vmatpush2.xpose.msra.mxu0 0.0
        %1145 = vmatprep.mubr.f32.mxu0 0.0
        %1146 = vmatmul.mubr.f32.gmra.mxu0 %v1076
        %v1147 = vpop.f32.mrf.mxu0
        %v1148 = vadd.f32 0.0, %v1147
        %v1149 = vpop.f32.mrf.mxu0
        %1150 = vdwg.mxu0
        %v1152 = vsel %vm998, %v700, 0
        %v1155 = vsel %vm998, %v848, 0
        %1157 = vmatprep.subr.mxu0 0.0
        %1158 = vmatpush1.xpose.msra.mxu0 0.0
        %1159 = vmatprep.subr.mxu0 0.0
        %1160 = vmatpush1.xpose.msra.mxu0 0.0
        %1161 = vmatprep.subr.mxu0 0.0
        %1162 = vmatpush1.xpose.msra.mxu0 0.0
        %1163 = vmatprep.subr.mxu0 0.0
        %1164 = vmatpush1.xpose.msra.mxu0 0.0
        %1165 = vmatprep.subr.mxu0 0.0
        %1166 = vmatpush1.xpose.msra.mxu0 0.0
        %1167 = vmatprep.subr.mxu0 0.0
        %1168 = vmatpush1.xpose.msra.mxu0 0.0
        %1169 = vmatprep.subr.mxu0 0.0
        %1170 = vmatpush1.xpose.msra.mxu0 0.0
        %1171 = vmatprep.subr.mxu0 0.0
        %1172 = vmatpush1.xpose.msra.mxu0 0.0
        %1173 = vmatprep.subr.mxu0 0.0
        %1174 = vmatpush1.xpose.msra.mxu0 0.0
        %1175 = vmatprep.subr.mxu0 0.0
        %1176 = vmatpush1.xpose.msra.mxu0 0.0
        %1177 = vmatprep.subr.mxu0 0.0
        %1178 = vmatpush1.xpose.msra.mxu0 0.0
        %1179 = vmatprep.subr.mxu0 0.0
        %1180 = vmatpush1.xpose.msra.mxu0 0.0
        %1181 = vmatprep.subr.mxu0 0.0
        %1182 = vmatpush1.xpose.msra.mxu0 0.0
        %1183 = vmatprep.subr.mxu0 0.0
        %1184 = vmatpush1.xpose.msra.mxu0 0.0
        %1185 = vmatprep.subr.mxu0 0.0
        %1186 = vmatpush1.xpose.msra.mxu0 0.0
        %1187 = vmatprep.subr.mxu0 0.0
        %1188 = vmatpush1.xpose.msra.mxu0 %v1155
        %1189 = vmatprep.subr.mxu0 0.0
        %1190 = vmatpush2.xpose.msra.mxu0 0.0
        %1191 = vmatprep.subr.mxu0 0.0
        %1192 = vmatpush2.xpose.msra.mxu0 0.0
        %1193 = vmatprep.subr.mxu0 0.0
        %1194 = vmatpush2.xpose.msra.mxu0 0.0
        %1195 = vmatprep.subr.mxu0 0.0
        %1196 = vmatpush2.xpose.msra.mxu0 0.0
        %1197 = vmatprep.subr.mxu0 0.0
        %1198 = vmatpush2.xpose.msra.mxu0 0.0
        %1199 = vmatprep.subr.mxu0 0.0
        %1200 = vmatpush2.xpose.msra.mxu0 0.0
        %1201 = vmatprep.subr.mxu0 0.0
        %1202 = vmatpush2.xpose.msra.mxu0 0.0
        %1203 = vmatprep.subr.mxu0 0.0
        %1204 = vmatpush2.xpose.msra.mxu0 0.0
        %1205 = vmatprep.subr.mxu0 0.0
        %1206 = vmatpush2.xpose.msra.mxu0 0.0
        %1207 = vmatprep.subr.mxu0 0.0
        %1208 = vmatpush2.xpose.msra.mxu0 0.0
        %1209 = vmatprep.subr.mxu0 0.0
        %1210 = vmatpush2.xpose.msra.mxu0 0.0
        %1211 = vmatprep.subr.mxu0 0.0
        %1212 = vmatpush2.xpose.msra.mxu0 0.0
        %1213 = vmatprep.subr.mxu0 0.0
        %1214 = vmatpush2.xpose.msra.mxu0 0.0
        %1215 = vmatprep.subr.mxu0 0.0
        %1216 = vmatpush2.xpose.msra.mxu0 0.0
        %1217 = vmatprep.subr.mxu0 0.0
        %1218 = vmatpush2.xpose.msra.mxu0 0.0
        %1219 = vmatprep.subr.mxu0 0.0
        %1220 = vmatpush2.xpose.msra.mxu0 0.0
        %1221 = vmatprep.mubr.f32.mxu0 0.0
        %1222 = vmatmul.mubr.f32.gmra.mxu0 %v1152
        %v1223 = vpop.f32.mrf.mxu0
        %v1224 = vadd.f32 0.0, %v1223
        %v1225 = vpop.f32.mrf.mxu0
        %1226 = vdwg.mxu0
        %v1228 = vsel %vm998, %v701, 0
        %v1231 = vsel %vm998, %v849, 0
        %1233 = vmatprep.subr.mxu0 0.0
        %1234 = vmatpush1.xpose.msra.mxu0 0.0
        %1235 = vmatprep.subr.mxu0 0.0
        %1236 = vmatpush1.xpose.msra.mxu0 0.0
        %1237 = vmatprep.subr.mxu0 0.0
        %1238 = vmatpush1.xpose.msra.mxu0 0.0
        %1239 = vmatprep.subr.mxu0 0.0
        %1240 = vmatpush1.xpose.msra.mxu0 0.0
        %1241 = vmatprep.subr.mxu0 0.0
        %1242 = vmatpush1.xpose.msra.mxu0 0.0
        %1243 = vmatprep.subr.mxu0 0.0
        %1244 = vmatpush1.xpose.msra.mxu0 0.0
        %1245 = vmatprep.subr.mxu0 0.0
        %1246 = vmatpush1.xpose.msra.mxu0 0.0
        %1247 = vmatprep.subr.mxu0 0.0
        %1248 = vmatpush1.xpose.msra.mxu0 0.0
        %1249 = vmatprep.subr.mxu0 0.0
        %1250 = vmatpush1.xpose.msra.mxu0 0.0
        %1251 = vmatprep.subr.mxu0 0.0
        %1252 = vmatpush1.xpose.msra.mxu0 0.0
        %1253 = vmatprep.subr.mxu0 0.0
        %1254 = vmatpush1.xpose.msra.mxu0 0.0
        %1255 = vmatprep.subr.mxu0 0.0
        %1256 = vmatpush1.xpose.msra.mxu0 0.0
        %1257 = vmatprep.subr.mxu0 0.0
        %1258 = vmatpush1.xpose.msra.mxu0 0.0
        %1259 = vmatprep.subr.mxu0 0.0
        %1260 = vmatpush1.xpose.msra.mxu0 0.0
        %1261 = vmatprep.subr.mxu0 0.0
        %1262 = vmatpush1.xpose.msra.mxu0 0.0
        %1263 = vmatprep.subr.mxu0 0.0
        %1264 = vmatpush1.xpose.msra.mxu0 %v1231
        %1265 = vmatprep.subr.mxu0 0.0
        %1266 = vmatpush2.xpose.msra.mxu0 0.0
        %1267 = vmatprep.subr.mxu0 0.0
        %1268 = vmatpush2.xpose.msra.mxu0 0.0
        %1269 = vmatprep.subr.mxu0 0.0
        %1270 = vmatpush2.xpose.msra.mxu0 0.0
        %1271 = vmatprep.subr.mxu0 0.0
        %1272 = vmatpush2.xpose.msra.mxu0 0.0
        %1273 = vmatprep.subr.mxu0 0.0
        %1274 = vmatpush2.xpose.msra.mxu0 0.0
        %1275 = vmatprep.subr.mxu0 0.0
        %1276 = vmatpush2.xpose.msra.mxu0 0.0
        %1277 = vmatprep.subr.mxu0 0.0
        %1278 = vmatpush2.xpose.msra.mxu0 0.0
        %1279 = vmatprep.subr.mxu0 0.0
        %1280 = vmatpush2.xpose.msra.mxu0 0.0
        %1281 = vmatprep.subr.mxu0 0.0
        %1282 = vmatpush2.xpose.msra.mxu0 0.0
        %1283 = vmatprep.subr.mxu0 0.0
        %1284 = vmatpush2.xpose.msra.mxu0 0.0
        %1285 = vmatprep.subr.mxu0 0.0
        %1286 = vmatpush2.xpose.msra.mxu0 0.0
        %1287 = vmatprep.subr.mxu0 0.0
        %1288 = vmatpush2.xpose.msra.mxu0 0.0
        %1289 = vmatprep.subr.mxu0 0.0
        %1290 = vmatpush2.xpose.msra.mxu0 0.0
        %1291 = vmatprep.subr.mxu0 0.0
        %1292 = vmatpush2.xpose.msra.mxu0 0.0
        %1293 = vmatprep.subr.mxu0 0.0
        %1294 = vmatpush2.xpose.msra.mxu0 0.0
        %1295 = vmatprep.subr.mxu0 0.0
        %1296 = vmatpush2.xpose.msra.mxu0 0.0
        %1297 = vmatprep.mubr.f32.mxu0 0.0
        %1298 = vmatmul.mubr.f32.gmra.mxu0 %v1228
        %v1299 = vpop.f32.mrf.mxu0
        %v1300 = vadd.f32 0.0, %v1299
        %v1301 = vpop.f32.mrf.mxu0
        %1302 = vdwg.mxu0
        %v1303 = vlaneseq
        %v1304 = vshrl.u32 %v1303, 7
        %v1305 = vlaneseq
        %v1306 = vand.u32 %v1305, 127
        %vm1307 = vcmp.le.s32.totalorder %v1306, %v1304
        %v1308 = vsel %vm1307, 1, 0
        %vm1309 = vcmp.eq.s32.totalorder %v1308, 1
        %v1310 = vsel %vm1309, %v1072, -1e+30
        %v1311 = vsel %vm1309, %v1148, -1e+30
        %v1312 = vsel %vm1309, %v1224, -1e+30
        %v1313 = vsel %vm1309, %v1300, -1e+30
        %v1314 = vsel %vm998, %v1310, -inf
        %1315 = vmax.xlane.f32.xlu0 %v1314
        %v1316 = vpop.xlane.xlu0 %1315
        %v1317 = vsel %vm998, %v1311, -inf
        %1318 = vmax.xlane.f32.xlu0 %v1317
        %v1319 = vpop.xlane.xlu0 %1318
        %v1320 = vsel %vm998, %v1312, -inf
        %1321 = vmax.xlane.f32.xlu0 %v1320
        %v1322 = vpop.xlane.xlu0 %1321
        %v1323 = vsel %vm998, %v1313, -inf
        %1324 = vmax.xlane.f32.xlu0 %v1323
        %v1325 = vpop.xlane.xlu0 %1324
        %v1326 = vsub.f32 %v1310, %v1316
        %v1327 = vsub.f32 %v1311, %v1319
        %v1328 = vsub.f32 %v1312, %v1322
        %v1329 = vsub.f32 %v1313, %v1325
        %v1330 = vmul.f32 %v1326, 1.442695
        %v1331 = vpow.pop %v1330
        %v1332 = vmul.f32 %v1327, 1.442695
        %v1333 = vpow.pop %v1332
        %v1334 = vmul.f32 %v1328, 1.442695
        %v1335 = vpow.pop %v1334
        %v1336 = vmul.f32 %v1329, 1.442695
        %v1337 = vpow.pop %v1336
        %v1338 = vsel %vm998, %v1331, 0.0
        %1339 = vadd.xlane.f32.xlu0 %v1338
        %v1340 = vpop.xlane.xlu0 %1339
        %v1341 = vsel %vm998, %v1333, 0.0
        %1342 = vadd.xlane.f32.xlu0 %v1341
        %v1343 = vpop.xlane.xlu0 %1342
        %v1344 = vsel %vm998, %v1335, 0.0
        %1345 = vadd.xlane.f32.xlu0 %v1344
        %v1346 = vpop.xlane.xlu0 %1345
        %v1347 = vsel %vm998, %v1337, 0.0
        %1348 = vadd.xlane.f32.xlu0 %v1347
        %v1349 = vpop.xlane.xlu0 %1348
        %v1350 = vrcp.pop %v1340
        %v1351 = vmul.f32 %v1331, %v1350
        %v1352 = vrcp.pop %v1343
        %v1353 = vmul.f32 %v1333, %v1352
        %v1354 = vrcp.pop %v1346
        %v1355 = vmul.f32 %v1335, %v1354
        %v1356 = vrcp.pop %v1349
        %v1357 = vmul.f32 %v1337, %v1356
        %1358 = vst.msk [vmem:[%s442] sm:$0xff] %vm998, %v1351
        %v1360 = vsel %vm998, %v1351, 0
        %1362 = vmatprep.subr.mxu0 0.0
        %1363 = vmatpush1.msra.mxu0 0.0
        %1364 = vmatprep.subr.mxu0 0.0
        %1365 = vmatpush1.msra.mxu0 0.0
        %1366 = vmatprep.subr.mxu0 0.0
        %1367 = vmatpush1.msra.mxu0 0.0
        %1368 = vmatprep.subr.mxu0 0.0
        %1369 = vmatpush1.msra.mxu0 0.0
        %1370 = vmatprep.subr.mxu0 0.0
        %1371 = vmatpush1.msra.mxu0 0.0
        %1372 = vmatprep.subr.mxu0 0.0
        %1373 = vmatpush1.msra.mxu0 0.0
        %1374 = vmatprep.subr.mxu0 0.0
        %1375 = vmatpush1.msra.mxu0 0.0
        %1376 = vmatprep.subr.mxu0 0.0
        %1377 = vmatpush1.msra.mxu0 0.0
        %1378 = vmatprep.subr.mxu0 0.0
        %1379 = vmatpush1.msra.mxu0 0.0
        %1380 = vmatprep.subr.mxu0 0.0
        %1381 = vmatpush1.msra.mxu0 0.0
        %1382 = vmatprep.subr.mxu0 0.0
        %1383 = vmatpush1.msra.mxu0 0.0
        %1384 = vmatprep.subr.mxu0 0.0
        %1385 = vmatpush1.msra.mxu0 0.0
        %1386 = vmatprep.subr.mxu0 0.0
        %1387 = vmatpush1.msra.mxu0 0.0
        %1388 = vmatprep.subr.mxu0 0.0
        %1389 = vmatpush1.msra.mxu0 0.0
        %1390 = vmatprep.subr.mxu0 0.0
        %1391 = vmatpush1.msra.mxu0 0.0
        %1392 = vmatprep.subr.mxu0 0.0
        %1393 = vmatpush1.msra.mxu0 %v994
        %1394 = vmatprep.subr.mxu0 0.0
        %1395 = vmatpush2.msra.mxu0 0.0
        %1396 = vmatprep.subr.mxu0 0.0
        %1397 = vmatpush2.msra.mxu0 0.0
        %1398 = vmatprep.subr.mxu0 0.0
        %1399 = vmatpush2.msra.mxu0 0.0
        %1400 = vmatprep.subr.mxu0 0.0
        %1401 = vmatpush2.msra.mxu0 0.0
        %1402 = vmatprep.subr.mxu0 0.0
        %1403 = vmatpush2.msra.mxu0 0.0
        %1404 = vmatprep.subr.mxu0 0.0
        %1405 = vmatpush2.msra.mxu0 0.0
        %1406 = vmatprep.subr.mxu0 0.0
        %1407 = vmatpush2.msra.mxu0 0.0
        %1408 = vmatprep.subr.mxu0 0.0
        %1409 = vmatpush2.msra.mxu0 0.0
        %1410 = vmatprep.subr.mxu0 0.0
        %1411 = vmatpush2.msra.mxu0 0.0
        %1412 = vmatprep.subr.mxu0 0.0
        %1413 = vmatpush2.msra.mxu0 0.0
        %1414 = vmatprep.subr.mxu0 0.0
        %1415 = vmatpush2.msra.mxu0 0.0
        %1416 = vmatprep.subr.mxu0 0.0
        %1417 = vmatpush2.msra.mxu0 0.0
        %1418 = vmatprep.subr.mxu0 0.0
        %1419 = vmatpush2.msra.mxu0 0.0
        %1420 = vmatprep.subr.mxu0 0.0
        %1421 = vmatpush2.msra.mxu0 0.0
        %1422 = vmatprep.subr.mxu0 0.0
        %1423 = vmatpush2.msra.mxu0 0.0
        %1424 = vmatprep.subr.mxu0 0.0
        %1425 = vmatpush2.msra.mxu0 0.0
        %1426 = vmatprep.mubr.f32.mxu0 0.0
        %1427 = vmatmul.mubr.f32.gmra.mxu0 %v1360
        %v1428 = vpop.f32.mrf.mxu0
        %v1429 = vadd.f32 0.0, %v1428
        %v1430 = vpop.f32.mrf.mxu0
        %1431 = vdwg.mxu0
        %v1433 = vsel %vm998, %v1353, 0
        %1435 = vmatprep.subr.mxu0 0.0
        %1436 = vmatpush1.msra.mxu0 0.0
        %1437 = vmatprep.subr.mxu0 0.0
        %1438 = vmatpush1.msra.mxu0 0.0
        %1439 = vmatprep.subr.mxu0 0.0
        %1440 = vmatpush1.msra.mxu0 0.0
        %1441 = vmatprep.subr.mxu0 0.0
        %1442 = vmatpush1.msra.mxu0 0.0
        %1443 = vmatprep.subr.mxu0 0.0
        %1444 = vmatpush1.msra.mxu0 0.0
        %1445 = vmatprep.subr.mxu0 0.0
        %1446 = vmatpush1.msra.mxu0 0.0
        %1447 = vmatprep.subr.mxu0 0.0
        %1448 = vmatpush1.msra.mxu0 0.0
        %1449 = vmatprep.subr.mxu0 0.0
        %1450 = vmatpush1.msra.mxu0 0.0
        %1451 = vmatprep.subr.mxu0 0.0
        %1452 = vmatpush1.msra.mxu0 0.0
        %1453 = vmatprep.subr.mxu0 0.0
        %1454 = vmatpush1.msra.mxu0 0.0
        %1455 = vmatprep.subr.mxu0 0.0
        %1456 = vmatpush1.msra.mxu0 0.0
        %1457 = vmatprep.subr.mxu0 0.0
        %1458 = vmatpush1.msra.mxu0 0.0
        %1459 = vmatprep.subr.mxu0 0.0
        %1460 = vmatpush1.msra.mxu0 0.0
        %1461 = vmatprep.subr.mxu0 0.0
        %1462 = vmatpush1.msra.mxu0 0.0
        %1463 = vmatprep.subr.mxu0 0.0
        %1464 = vmatpush1.msra.mxu0 0.0
        %1465 = vmatprep.subr.mxu0 0.0
        %1466 = vmatpush1.msra.mxu0 %v995
        %1467 = vmatprep.subr.mxu0 0.0
        %1468 = vmatpush2.msra.mxu0 0.0
        %1469 = vmatprep.subr.mxu0 0.0
        %1470 = vmatpush2.msra.mxu0 0.0
        %1471 = vmatprep.subr.mxu0 0.0
        %1472 = vmatpush2.msra.mxu0 0.0
        %1473 = vmatprep.subr.mxu0 0.0
        %1474 = vmatpush2.msra.mxu0 0.0
        %1475 = vmatprep.subr.mxu0 0.0
        %1476 = vmatpush2.msra.mxu0 0.0
        %1477 = vmatprep.subr.mxu0 0.0
        %1478 = vmatpush2.msra.mxu0 0.0
        %1479 = vmatprep.subr.mxu0 0.0
        %1480 = vmatpush2.msra.mxu0 0.0
        %1481 = vmatprep.subr.mxu0 0.0
        %1482 = vmatpush2.msra.mxu0 0.0
        %1483 = vmatprep.subr.mxu0 0.0
        %1484 = vmatpush2.msra.mxu0 0.0
        %1485 = vmatprep.subr.mxu0 0.0
        %1486 = vmatpush2.msra.mxu0 0.0
        %1487 = vmatprep.subr.mxu0 0.0
        %1488 = vmatpush2.msra.mxu0 0.0
        %1489 = vmatprep.subr.mxu0 0.0
        %1490 = vmatpush2.msra.mxu0 0.0
        %1491 = vmatprep.subr.mxu0 0.0
        %1492 = vmatpush2.msra.mxu0 0.0
        %1493 = vmatprep.subr.mxu0 0.0
        %1494 = vmatpush2.msra.mxu0 0.0
        %1495 = vmatprep.subr.mxu0 0.0
        %1496 = vmatpush2.msra.mxu0 0.0
        %1497 = vmatprep.subr.mxu0 0.0
        %1498 = vmatpush2.msra.mxu0 0.0
        %1499 = vmatprep.mubr.f32.mxu0 0.0
        %1500 = vmatmul.mubr.f32.gmra.mxu0 %v1433
        %v1501 = vpop.f32.mrf.mxu0
        %v1502 = vadd.f32 0.0, %v1501
        %v1503 = vpop.f32.mrf.mxu0
        %1504 = vdwg.mxu0
        %v1506 = vsel %vm998, %v1355, 0
        %1508 = vmatprep.subr.mxu0 0.0
        %1509 = vmatpush1.msra.mxu0 0.0
        %1510 = vmatprep.subr.mxu0 0.0
        %1511 = vmatpush1.msra.mxu0 0.0
        %1512 = vmatprep.subr.mxu0 0.0
        %1513 = vmatpush1.msra.mxu0 0.0
        %1514 = vmatprep.subr.mxu0 0.0
        %1515 = vmatpush1.msra.mxu0 0.0
        %1516 = vmatprep.subr.mxu0 0.0
        %1517 = vmatpush1.msra.mxu0 0.0
        %1518 = vmatprep.subr.mxu0 0.0
        %1519 = vmatpush1.msra.mxu0 0.0
        %1520 = vmatprep.subr.mxu0 0.0
        %1521 = vmatpush1.msra.mxu0 0.0
        %1522 = vmatprep.subr.mxu0 0.0
        %1523 = vmatpush1.msra.mxu0 0.0
        %1524 = vmatprep.subr.mxu0 0.0
        %1525 = vmatpush1.msra.mxu0 0.0
        %1526 = vmatprep.subr.mxu0 0.0
        %1527 = vmatpush1.msra.mxu0 0.0
        %1528 = vmatprep.subr.mxu0 0.0
        %1529 = vmatpush1.msra.mxu0 0.0
        %1530 = vmatprep.subr.mxu0 0.0
        %1531 = vmatpush1.msra.mxu0 0.0
        %1532 = vmatprep.subr.mxu0 0.0
        %1533 = vmatpush1.msra.mxu0 0.0
        %1534 = vmatprep.subr.mxu0 0.0
        %1535 = vmatpush1.msra.mxu0 0.0
        %1536 = vmatprep.subr.mxu0 0.0
        %1537 = vmatpush1.msra.mxu0 0.0
        %1538 = vmatprep.subr.mxu0 0.0
        %1539 = vmatpush1.msra.mxu0 %v996
        %1540 = vmatprep.subr.mxu0 0.0
        %1541 = vmatpush2.msra.mxu0 0.0
        %1542 = vmatprep.subr.mxu0 0.0
        %1543 = vmatpush2.msra.mxu0 0.0
        %1544 = vmatprep.subr.mxu0 0.0
        %1545 = vmatpush2.msra.mxu0 0.0
        %1546 = vmatprep.subr.mxu0 0.0
        %1547 = vmatpush2.msra.mxu0 0.0
        %1548 = vmatprep.subr.mxu0 0.0
        %1549 = vmatpush2.msra.mxu0 0.0
        %1550 = vmatprep.subr.mxu0 0.0
        %1551 = vmatpush2.msra.mxu0 0.0
        %1552 = vmatprep.subr.mxu0 0.0
        %1553 = vmatpush2.msra.mxu0 0.0
        %1554 = vmatprep.subr.mxu0 0.0
        %1555 = vmatpush2.msra.mxu0 0.0
        %1556 = vmatprep.subr.mxu0 0.0
        %1557 = vmatpush2.msra.mxu0 0.0
        %1558 = vmatprep.subr.mxu0 0.0
        %1559 = vmatpush2.msra.mxu0 0.0
        %1560 = vmatprep.subr.mxu0 0.0
        %1561 = vmatpush2.msra.mxu0 0.0
        %1562 = vmatprep.subr.mxu0 0.0
        %1563 = vmatpush2.msra.mxu0 0.0
        %1564 = vmatprep.subr.mxu0 0.0
        %1565 = vmatpush2.msra.mxu0 0.0
        %1566 = vmatprep.subr.mxu0 0.0
        %1567 = vmatpush2.msra.mxu0 0.0
        %1568 = vmatprep.subr.mxu0 0.0
        %1569 = vmatpush2.msra.mxu0 0.0
        %1570 = vmatprep.subr.mxu0 0.0
        %1571 = vmatpush2.msra.mxu0 0.0
        %1572 = vmatprep.mubr.f32.mxu0 0.0
        %1573 = vmatmul.mubr.f32.gmra.mxu0 %v1506
        %v1574 = vpop.f32.mrf.mxu0
        %v1575 = vadd.f32 0.0, %v1574
        %v1576 = vpop.f32.mrf.mxu0
        %1577 = vdwg.mxu0
        %v1579 = vsel %vm998, %v1357, 0
        %1581 = vmatprep.subr.mxu0 0.0
        %1582 = vmatpush1.msra.mxu0 0.0
        %1583 = vmatprep.subr.mxu0 0.0
        %1584 = vmatpush1.msra.mxu0 0.0
        %1585 = vmatprep.subr.mxu0 0.0
        %1586 = vmatpush1.msra.mxu0 0.0
        %1587 = vmatprep.subr.mxu0 0.0
        %1588 = vmatpush1.msra.mxu0 0.0
        %1589 = vmatprep.subr.mxu0 0.0
        %1590 = vmatpush1.msra.mxu0 0.0
        %1591 = vmatprep.subr.mxu0 0.0
        %1592 = vmatpush1.msra.mxu0 0.0
        %1593 = vmatprep.subr.mxu0 0.0
        %1594 = vmatpush1.msra.mxu0 0.0
        %1595 = vmatprep.subr.mxu0 0.0
        %1596 = vmatpush1.msra.mxu0 0.0
        %1597 = vmatprep.subr.mxu0 0.0
        %1598 = vmatpush1.msra.mxu0 0.0
        %1599 = vmatprep.subr.mxu0 0.0
        %1600 = vmatpush1.msra.mxu0 0.0
        %1601 = vmatprep.subr.mxu0 0.0
        %1602 = vmatpush1.msra.mxu0 0.0
        %1603 = vmatprep.subr.mxu0 0.0
        %1604 = vmatpush1.msra.mxu0 0.0
        %1605 = vmatprep.subr.mxu0 0.0
        %1606 = vmatpush1.msra.mxu0 0.0
        %1607 = vmatprep.subr.mxu0 0.0
        %1608 = vmatpush1.msra.mxu0 0.0
        %1609 = vmatprep.subr.mxu0 0.0
        %1610 = vmatpush1.msra.mxu0 0.0
        %1611 = vmatprep.subr.mxu0 0.0
        %1612 = vmatpush1.msra.mxu0 %v997
        %1613 = vmatprep.subr.mxu0 0.0
        %1614 = vmatpush2.msra.mxu0 0.0
        %1615 = vmatprep.subr.mxu0 0.0
        %1616 = vmatpush2.msra.mxu0 0.0
        %1617 = vmatprep.subr.mxu0 0.0
        %1618 = vmatpush2.msra.mxu0 0.0
        %1619 = vmatprep.subr.mxu0 0.0
        %1620 = vmatpush2.msra.mxu0 0.0
        %1621 = vmatprep.subr.mxu0 0.0
        %1622 = vmatpush2.msra.mxu0 0.0
        %1623 = vmatprep.subr.mxu0 0.0
        %1624 = vmatpush2.msra.mxu0 0.0
        %1625 = vmatprep.subr.mxu0 0.0
        %1626 = vmatpush2.msra.mxu0 0.0
        %1627 = vmatprep.subr.mxu0 0.0
        %1628 = vmatpush2.msra.mxu0 0.0
        %1629 = vmatprep.subr.mxu0 0.0
        %1630 = vmatpush2.msra.mxu0 0.0
        %1631 = vmatprep.subr.mxu0 0.0
        %1632 = vmatpush2.msra.mxu0 0.0
        %1633 = vmatprep.subr.mxu0 0.0
        %1634 = vmatpush2.msra.mxu0 0.0
        %1635 = vmatprep.subr.mxu0 0.0
        %1636 = vmatpush2.msra.mxu0 0.0
        %1637 = vmatprep.subr.mxu0 0.0
        %1638 = vmatpush2.msra.mxu0 0.0
        %1639 = vmatprep.subr.mxu0 0.0
        %1640 = vmatpush2.msra.mxu0 0.0
        %1641 = vmatprep.subr.mxu0 0.0
        %1642 = vmatpush2.msra.mxu0 0.0
        %1643 = vmatprep.subr.mxu0 0.0
        %1644 = vmatpush2.msra.mxu0 0.0
        %1645 = vmatprep.mubr.f32.mxu0 0.0
        %1646 = vmatmul.mubr.f32.gmra.mxu0 %v1579
        %v1647 = vpop.f32.mrf.mxu0
        %v1648 = vadd.f32 0.0, %v1647
        %v1649 = vpop.f32.mrf.mxu0
        %1650 = vdwg.mxu0
        %v1651 = vcombine.low %v1429, %v1575
        %v1652 = vcombine.high %v1429, %v1575
        %v1654 = vunpack.c.l.s4 1983009808
        %v1655 = vunpack.c.0.s8 %v1654
        %v1656 = vlaneseq
        %v1657 = vshrl.u32 %v1656, 7
        %v1658 = vsub.s32 %v1655, %v1657
        %v1659 = vrot.slane %v1651, %v1658
        %v1661 = vunpack.c.l.s4 1983009808
        %v1662 = vunpack.c.0.s8 %v1661
        %v1663 = vlaneseq
        %v1664 = vshrl.u32 %v1663, 7
        %v1665 = vsub.s32 %v1662, %v1664
        %v1666 = vrot.slane %v1652, %v1665
        %v1667 = vcombine.low %v1502, %v1648
        %v1668 = vcombine.high %v1502, %v1648
        %v1670 = vunpack.c.l.s4 1983009808
        %v1671 = vunpack.c.0.s8 %v1670
        %v1672 = vlaneseq
        %v1673 = vshrl.u32 %v1672, 7
        %v1674 = vsub.s32 %v1671, %v1673
        %v1675 = vrot.slane %v1667, %v1674
        %v1677 = vunpack.c.l.s4 1983009808
        %v1678 = vunpack.c.0.s8 %v1677
        %v1679 = vlaneseq
        %v1680 = vshrl.u32 %v1679, 7
        %v1681 = vsub.s32 %v1678, %v1680
        %v1682 = vrot.slane %v1668, %v1681
        %v1683 = vcombine.low %v1659, %v1675
        %v1684 = vcombine.high %v1659, %v1675
        %v1686 = vunpack.c.l.s4 1934713408
        %v1687 = vunpack.c.0.s8 %v1686
        %v1688 = vlaneseq
        %v1689 = vshrl.u32 %v1688, 7
        %v1690 = vsub.s32 %v1687, %v1689
        %v1691 = vrot.slane %v1683, %v1690
        %v1693 = vunpack.c.l.s4 1934713408
        %v1694 = vunpack.c.0.s8 %v1693
        %v1695 = vlaneseq
        %v1696 = vshrl.u32 %v1695, 7
        %v1697 = vsub.s32 %v1694, %v1696
        %v1698 = vrot.slane %v1684, %v1697
        %v1699 = vcombine.low %v1666, %v1682
        %v1700 = vcombine.high %v1666, %v1682
        %v1702 = vunpack.c.l.s4 1934713408
        %v1703 = vunpack.c.0.s8 %v1702
        %v1704 = vlaneseq
        %v1705 = vshrl.u32 %v1704, 7
        %v1706 = vsub.s32 %v1703, %v1705
        %v1707 = vrot.slane %v1699, %v1706
        %v1709 = vunpack.c.l.s4 1934713408
        %v1710 = vunpack.c.0.s8 %v1709
        %v1711 = vlaneseq
        %v1712 = vshrl.u32 %v1711, 7
        %v1713 = vsub.s32 %v1710, %v1712
        %v1714 = vrot.slane %v1700, %v1713
        %v1715 = vcombine.high %v1691, 0.0
        %v1716 = vcombine.high %v1698, 0.0
        %v1717 = vcombine.high %v1707, 0.0
        %v1718 = vcombine.high %v1714, 0.0
        %v1719 = vcombine.low %v1691, %v1698
        %v1721 = vunpack.c.l.s4 1983009808
        %v1722 = vunpack.c.0.s8 %v1721
        %v1723 = vlaneseq
        %v1724 = vshrl.u32 %v1723, 7
        %v1725 = vsub.s32 %v1722, %v1724
        %v1726 = vrot.slane %v1719, %v1725
        %v1727 = vcombine.low %v1715, %v1716
        %v1729 = vunpack.c.l.s4 1983009808
        %v1730 = vunpack.c.0.s8 %v1729
        %v1731 = vlaneseq
        %v1732 = vshrl.u32 %v1731, 7
        %v1733 = vsub.s32 %v1730, %v1732
        %v1734 = vrot.slane %v1727, %v1733
        %v1735 = vcombine.low %v1707, %v1714
        %v1737 = vunpack.c.l.s4 1983009808
        %v1738 = vunpack.c.0.s8 %v1737
        %v1739 = vlaneseq
        %v1740 = vshrl.u32 %v1739, 7
        %v1741 = vsub.s32 %v1738, %v1740
        %v1742 = vrot.slane %v1735, %v1741
        %v1743 = vcombine.low %v1717, %v1718
        %v1745 = vunpack.c.l.s4 1983009808
        %v1746 = vunpack.c.0.s8 %v1745
        %v1747 = vlaneseq
        %v1748 = vshrl.u32 %v1747, 7
        %v1749 = vsub.s32 %v1746, %v1748
        %v1750 = vrot.slane %v1743, %v1749
        %v1751 = vcombine.low %v1726, %v1734
        %v1752 = vcombine.high %v1726, %v1734
        %v1754 = vunpack.c.l.s4 1934713408
        %v1755 = vunpack.c.0.s8 %v1754
        %v1756 = vlaneseq
        %v1757 = vshrl.u32 %v1756, 7
        %v1758 = vsub.s32 %v1755, %v1757
        %v1759 = vrot.slane %v1751, %v1758
        %v1761 = vunpack.c.l.s4 1934713408
        %v1762 = vunpack.c.0.s8 %v1761
        %v1763 = vlaneseq
        %v1764 = vshrl.u32 %v1763, 7
        %v1765 = vsub.s32 %v1762, %v1764
        %v1766 = vrot.slane %v1752, %v1765
        %v1767 = vcombine.low %v1742, %v1750
        %v1768 = vcombine.high %v1742, %v1750
        %v1770 = vunpack.c.l.s4 1934713408
        %v1771 = vunpack.c.0.s8 %v1770
        %v1772 = vlaneseq
        %v1773 = vshrl.u32 %v1772, 7
        %v1774 = vsub.s32 %v1771, %v1773
        %v1775 = vrot.slane %v1767, %v1774
        %v1777 = vunpack.c.l.s4 1934713408
        %v1778 = vunpack.c.0.s8 %v1777
        %v1779 = vlaneseq
        %v1780 = vshrl.u32 %v1779, 7
        %v1781 = vsub.s32 %v1778, %v1780
        %v1782 = vrot.slane %v1768, %v1781
        %v1783 = vcombine.low %v1759, %v1775
        %v1784 = vcombine.high %v1759, %v1775
        %v1785 = vcombine.low %v1766, %v1782
        %v1786 = vcombine.high %v1766, %v1782
        %1788 = vrot.lane.b32.xlu0 %v1784, 8
        %v1789 = vpop.permute.xlu0 %1788
        %1792 = vrot.lane.b32.xlu0 %v1785, 16
        %v1793 = vpop.permute.xlu0 %1792
        %1796 = vrot.lane.b32.xlu0 %v1786, 24
        %v1797 = vpop.permute.xlu0 %1796
        %v1799 = vsel %vm998, %v1783, %v1789
        %vm1800 = vcmask 130048
        %v1801 = vsel %vm1800, %v1799, %v1793
        %vm1802 = vcmask 195584
        %v1803 = vsel %vm1802, %v1801, %v1797
        %v1804 = vld [vmem:[%s4] sm:$0xff]
        %v1805 = vld [vmem:[%s4 + $0x8] sm:$0xff]
        %v1806 = vld [vmem:[%s4 + $0x10] sm:$0xff]
        %v1807 = vld [vmem:[%s4 + $0x18] sm:$0xff]
        %v1808 = vld [vmem:[%s5] sm:$0x1]
        %v1810 = vlaneseq
        %v1811 = vshrl.u32 %v1810, 7
        %v1812 = vsub.s32 0, %v1811
        %v1813 = vrot.slane %v1808, %v1812
        %v1816 = vsel %vm450, %v1803, 0
        %1818 = vmatprep.subr.mxu0 0.0
        %1819 = vmatpush1.msra.mxu0 0.0
        %1820 = vmatprep.subr.mxu0 0.0
        %1821 = vmatpush1.msra.mxu0 0.0
        %1822 = vmatprep.subr.mxu0 0.0
        %1823 = vmatpush1.msra.mxu0 0.0
        %1824 = vmatprep.subr.mxu0 0.0
        %1825 = vmatpush1.msra.mxu0 0.0
        %1826 = vmatprep.subr.mxu0 0.0
        %1827 = vmatpush1.msra.mxu0 0.0
        %1828 = vmatprep.subr.mxu0 0.0
        %1829 = vmatpush1.msra.mxu0 0.0
        %1830 = vmatprep.subr.mxu0 0.0
        %1831 = vmatpush1.msra.mxu0 0.0
        %1832 = vmatprep.subr.mxu0 0.0
        %1833 = vmatpush1.msra.mxu0 0.0
        %1834 = vmatprep.subr.mxu0 0.0
        %1835 = vmatpush1.msra.mxu0 0.0
        %1836 = vmatprep.subr.mxu0 0.0
        %1837 = vmatpush1.msra.mxu0 0.0
        %1838 = vmatprep.subr.mxu0 0.0
        %1839 = vmatpush1.msra.mxu0 0.0
        %1840 = vmatprep.subr.mxu0 0.0
        %1841 = vmatpush1.msra.mxu0 0.0
        %1842 = vmatprep.subr.mxu0 0.0
        %1843 = vmatpush1.msra.mxu0 %v1807
        %1844 = vmatprep.subr.mxu0 0.0
        %1845 = vmatpush1.msra.mxu0 %v1806
        %1846 = vmatprep.subr.mxu0 0.0
        %1847 = vmatpush1.msra.mxu0 %v1805
        %1848 = vmatprep.subr.mxu0 0.0
        %1849 = vmatpush1.msra.mxu0 %v1804
        %1850 = vmatprep.subr.mxu0 0.0
        %1851 = vmatpush2.msra.mxu0 0.0
        %1852 = vmatprep.subr.mxu0 0.0
        %1853 = vmatpush2.msra.mxu0 0.0
        %1854 = vmatprep.subr.mxu0 0.0
        %1855 = vmatpush2.msra.mxu0 0.0
        %1856 = vmatprep.subr.mxu0 0.0
        %1857 = vmatpush2.msra.mxu0 0.0
        %1858 = vmatprep.subr.mxu0 0.0
        %1859 = vmatpush2.msra.mxu0 0.0
        %1860 = vmatprep.subr.mxu0 0.0
        %1861 = vmatpush2.msra.mxu0 0.0
        %1862 = vmatprep.subr.mxu0 0.0
        %1863 = vmatpush2.msra.mxu0 0.0
        %1864 = vmatprep.subr.mxu0 0.0
        %1865 = vmatpush2.msra.mxu0 0.0
        %1866 = vmatprep.subr.mxu0 0.0
        %1867 = vmatpush2.msra.mxu0 0.0
        %1868 = vmatprep.subr.mxu0 0.0
        %1869 = vmatpush2.msra.mxu0 0.0
        %1870 = vmatprep.subr.mxu0 0.0
        %1871 = vmatpush2.msra.mxu0 0.0
        %1872 = vmatprep.subr.mxu0 0.0
        %1873 = vmatpush2.msra.mxu0 0.0
        %1874 = vmatprep.subr.mxu0 0.0
        %1875 = vmatpush2.msra.mxu0 0.0
        %1876 = vmatprep.subr.mxu0 0.0
        %1877 = vmatpush2.msra.mxu0 0.0
        %1878 = vmatprep.subr.mxu0 0.0
        %1879 = vmatpush2.msra.mxu0 0.0
        %1880 = vmatprep.subr.mxu0 0.0
        %1881 = vmatpush2.msra.mxu0 0.0
        %1882 = vmatprep.mubr.f32.mxu0 0.0
        %1883 = vmatmul.mubr.f32.gmra.mxu0 %v1816
        %v1884 = vpop.f32.mrf.mxu0
        %v1885 = vadd.f32 %v1813, %v1884
        %v1886 = vpop.f32.mrf.mxu0
        %1887 = vdwg.mxu0
        %v1888 = vadd.f32 %v447, %v1885
        %v1889 = vld [vmem:[%s6] sm:$0x1]
        %v1890 = vld [vmem:[%s7] sm:$0x1]
        %v1891 = vsel %vm450, %v1888, 0.0
        %1892 = vadd.xlane.f32.xlu0 %v1891
        %v1893 = vpop.xlane.xlu0 %1892
        %v1894 = vmul.f32 %v1893, %v454
        %v1895 = vsub.f32 %v1888, %v1894
        %v1896 = vmul.f32 %v1895, %v1895
        %v1897 = vsel %vm450, %v1896, 0.0
        %1898 = vadd.xlane.f32.xlu0 %v1897
        %v1899 = vpop.xlane.xlu0 %1898
        %v1900 = vmul.f32 %v1899, %v454
        %v1901 = vadd.f32 %v1900, 1e-05
        %v1902 = vrsqrt.pop %v1901
        %v1903 = vmul.f32 %v1895, %v1902
        %v1905 = vlaneseq
        %v1906 = vshrl.u32 %v1905, 7
        %v1907 = vsub.s32 0, %v1906
        %v1908 = vrot.slane %v1889, %v1907
        %v1910 = vmul.f32 %v1903, %v1908
        %v1912 = vlaneseq
        %v1913 = vshrl.u32 %v1912, 7
        %v1914 = vsub.s32 0, %v1913
        %v1915 = vrot.slane %v1890, %v1914
        %v1917 = vadd.f32 %v1910, %v1915
        %v1918 = vld [vmem:[%s8] sm:$0xff]
        %v1919 = vld [vmem:[%s8 + $0x8] sm:$0xff]
        %v1920 = vld [vmem:[%s8 + $0x10] sm:$0xff]
        %v1921 = vld [vmem:[%s8 + $0x18] sm:$0xff]
        %v1922 = vld [vmem:[%s9] sm:$0x1]
        %v1924 = vlaneseq
        %v1925 = vshrl.u32 %v1924, 7
        %v1926 = vsub.s32 0, %v1925
        %v1927 = vrot.slane %v1922, %v1926
        %v1930 = vsel %vm450, %v1917, 0
        %1932 = vmatprep.subr.mxu0 0.0
        %1933 = vmatpush1.msra.mxu0 0.0
        %1934 = vmatprep.subr.mxu0 0.0
        %1935 = vmatpush1.msra.mxu0 0.0
        %1936 = vmatprep.subr.mxu0 0.0
        %1937 = vmatpush1.msra.mxu0 0.0
        %1938 = vmatprep.subr.mxu0 0.0
        %1939 = vmatpush1.msra.mxu0 0.0
        %1940 = vmatprep.subr.mxu0 0.0
        %1941 = vmatpush1.msra.mxu0 0.0
        %1942 = vmatprep.subr.mxu0 0.0
        %1943 = vmatpush1.msra.mxu0 0.0
        %1944 = vmatprep.subr.mxu0 0.0
        %1945 = vmatpush1.msra.mxu0 0.0
        %1946 = vmatprep.subr.mxu0 0.0
        %1947 = vmatpush1.msra.mxu0 0.0
        %1948 = vmatprep.subr.mxu0 0.0
        %1949 = vmatpush1.msra.mxu0 0.0
        %1950 = vmatprep.subr.mxu0 0.0
        %1951 = vmatpush1.msra.mxu0 0.0
        %1952 = vmatprep.subr.mxu0 0.0
        %1953 = vmatpush1.msra.mxu0 0.0
        %1954 = vmatprep.subr.mxu0 0.0
        %1955 = vmatpush1.msra.mxu0 0.0
        %1956 = vmatprep.subr.mxu0 0.0
        %1957 = vmatpush1.msra.mxu0 %v1921
        %1958 = vmatprep.subr.mxu0 0.0
        %1959 = vmatpush1.msra.mxu0 %v1920
        %1960 = vmatprep.subr.mxu0 0.0
        %1961 = vmatpush1.msra.mxu0 %v1919
        %1962 = vmatprep.subr.mxu0 0.0
        %1963 = vmatpush1.msra.mxu0 %v1918
        %1964 = vmatprep.subr.mxu0 0.0
        %1965 = vmatpush2.msra.mxu0 0.0
        %1966 = vmatprep.subr.mxu0 0.0
        %1967 = vmatpush2.msra.mxu0 0.0
        %1968 = vmatprep.subr.mxu0 0.0
        %1969 = vmatpush2.msra.mxu0 0.0
        %1970 = vmatprep.subr.mxu0 0.0
        %1971 = vmatpush2.msra.mxu0 0.0
        %1972 = vmatprep.subr.mxu0 0.0
        %1973 = vmatpush2.msra.mxu0 0.0
        %1974 = vmatprep.subr.mxu0 0.0
        %1975 = vmatpush2.msra.mxu0 0.0
        %1976 = vmatprep.subr.mxu0 0.0
        %1977 = vmatpush2.msra.mxu0 0.0
        %1978 = vmatprep.subr.mxu0 0.0
        %1979 = vmatpush2.msra.mxu0 0.0
        %1980 = vmatprep.subr.mxu0 0.0
        %1981 = vmatpush2.msra.mxu0 0.0
        %1982 = vmatprep.subr.mxu0 0.0
        %1983 = vmatpush2.msra.mxu0 0.0
        %1984 = vmatprep.subr.mxu0 0.0
        %1985 = vmatpush2.msra.mxu0 0.0
        %1986 = vmatprep.subr.mxu0 0.0
        %1987 = vmatpush2.msra.mxu0 0.0
        %1988 = vmatprep.subr.mxu0 0.0
        %1989 = vmatpush2.msra.mxu0 0.0
        %1990 = vmatprep.subr.mxu0 0.0
        %1991 = vmatpush2.msra.mxu0 0.0
        %1992 = vmatprep.subr.mxu0 0.0
        %1993 = vmatpush2.msra.mxu0 0.0
        %1994 = vmatprep.subr.mxu0 0.0
        %1995 = vmatpush2.msra.mxu0 0.0
        %1996 = vmatprep.mubr.f32.mxu0 0.0
        %1997 = vmatmul.mubr.f32.gmra.mxu0 %v1930
        %v1998 = vpop.f32.mrf.mxu0
        %v1999 = vadd.f32 %v1927, %v1998
        %v2000 = vpop.f32.mrf.mxu0
        %2001 = vdwg.mxu0
        %v2002 = vmax.f32 %v1999, 0.0
        %v2003 = vld [vmem:[%s10] sm:$0xff]
        %v2004 = vld [vmem:[%s10 + $0x8] sm:$0xff]
        %v2005 = vld [vmem:[%s10 + $0x10] sm:$0xff]
        %v2006 = vld [vmem:[%s10 + $0x18] sm:$0xff]
        %v2007 = vld [vmem:[%s10 + $0x20] sm:$0xff]
        %v2008 = vld [vmem:[%s10 + $0x28] sm:$0xff]
        %v2009 = vld [vmem:[%s10 + $0x30] sm:$0xff]
        %v2010 = vld [vmem:[%s10 + $0x38] sm:$0xff]
        %v2011 = vld [vmem:[%s10 + $0x40] sm:$0xff]
        %v2012 = vld [vmem:[%s10 + $0x48] sm:$0xff]
        %v2013 = vld [vmem:[%s10 + $0x50] sm:$0xff]
        %v2014 = vld [vmem:[%s10 + $0x58] sm:$0xff]
        %v2015 = vld [vmem:[%s10 + $0x60] sm:$0xff]
        %v2016 = vld [vmem:[%s10 + $0x68] sm:$0xff]
        %v2017 = vld [vmem:[%s10 + $0x70] sm:$0xff]
        %v2018 = vld [vmem:[%s10 + $0x78] sm:$0xff]
        %v2019 = vld [vmem:[%s11] sm:$0x1]
        %v2021 = vlaneseq
        %v2022 = vshrl.u32 %v2021, 7
        %v2023 = vsub.s32 0, %v2022
        %v2024 = vrot.slane %v2019, %v2023
        %2026 = vmatprep.subr.mxu0 0.0
        %2027 = vmatpush1.msra.mxu0 %v2018
        %2028 = vmatprep.subr.mxu0 0.0
        %2029 = vmatpush1.msra.mxu0 %v2017
        %2030 = vmatprep.subr.mxu0 0.0
        %2031 = vmatpush1.msra.mxu0 %v2016
        %2032 = vmatprep.subr.mxu0 0.0
        %2033 = vmatpush1.msra.mxu0 %v2015
        %2034 = vmatprep.subr.mxu0 0.0
        %2035 = vmatpush1.msra.mxu0 %v2014
        %2036 = vmatprep.subr.mxu0 0.0
        %2037 = vmatpush1.msra.mxu0 %v2013
        %2038 = vmatprep.subr.mxu0 0.0
        %2039 = vmatpush1.msra.mxu0 %v2012
        %2040 = vmatprep.subr.mxu0 0.0
        %2041 = vmatpush1.msra.mxu0 %v2011
        %2042 = vmatprep.subr.mxu0 0.0
        %2043 = vmatpush1.msra.mxu0 %v2010
        %2044 = vmatprep.subr.mxu0 0.0
        %2045 = vmatpush1.msra.mxu0 %v2009
        %2046 = vmatprep.subr.mxu0 0.0
        %2047 = vmatpush1.msra.mxu0 %v2008
        %2048 = vmatprep.subr.mxu0 0.0
        %2049 = vmatpush1.msra.mxu0 %v2007
        %2050 = vmatprep.subr.mxu0 0.0
        %2051 = vmatpush1.msra.mxu0 %v2006
        %2052 = vmatprep.subr.mxu0 0.0
        %2053 = vmatpush1.msra.mxu0 %v2005
        %2054 = vmatprep.subr.mxu0 0.0
        %2055 = vmatpush1.msra.mxu0 %v2004
        %2056 = vmatprep.subr.mxu0 0.0
        %2057 = vmatpush1.msra.mxu0 %v2003
        %2058 = vmatprep.subr.mxu0 0.0
        %2059 = vmatpush2.msra.mxu0 0.0
        %2060 = vmatprep.subr.mxu0 0.0
        %2061 = vmatpush2.msra.mxu0 0.0
        %2062 = vmatprep.subr.mxu0 0.0
        %2063 = vmatpush2.msra.mxu0 0.0
        %2064 = vmatprep.subr.mxu0 0.0
        %2065 = vmatpush2.msra.mxu0 0.0
        %2066 = vmatprep.subr.mxu0 0.0
        %2067 = vmatpush2.msra.mxu0 0.0
        %2068 = vmatprep.subr.mxu0 0.0
        %2069 = vmatpush2.msra.mxu0 0.0
        %2070 = vmatprep.subr.mxu0 0.0
        %2071 = vmatpush2.msra.mxu0 0.0
        %2072 = vmatprep.subr.mxu0 0.0
        %2073 = vmatpush2.msra.mxu0 0.0
        %2074 = vmatprep.subr.mxu0 0.0
        %2075 = vmatpush2.msra.mxu0 0.0
        %2076 = vmatprep.subr.mxu0 0.0
        %2077 = vmatpush2.msra.mxu0 0.0
        %2078 = vmatprep.subr.mxu0 0.0
        %2079 = vmatpush2.msra.mxu0 0.0
        %2080 = vmatprep.subr.mxu0 0.0
        %2081 = vmatpush2.msra.mxu0 0.0
        %2082 = vmatprep.subr.mxu0 0.0
        %2083 = vmatpush2.msra.mxu0 0.0
        %2084 = vmatprep.subr.mxu0 0.0
        %2085 = vmatpush2.msra.mxu0 0.0
        %2086 = vmatprep.subr.mxu0 0.0
        %2087 = vmatpush2.msra.mxu0 0.0
        %2088 = vmatprep.subr.mxu0 0.0
        %2089 = vmatpush2.msra.mxu0 0.0
        %2090 = vmatprep.mubr.f32.mxu0 0.0
        %2091 = vmatmul.mubr.f32.gmra.mxu0 %v2002
        %v2092 = vpop.f32.mrf.mxu0
        %v2093 = vadd.f32 %v2024, %v2092
        %v2094 = vpop.f32.mrf.mxu0
        %2095 = vdwg.mxu0
        %v2096 = vadd.f32 %v1888, %v2093
        %2097 = vst.msk [vmem:[%s435] sm:$0xff] %vm450, %v2096
        %s2098 = sand.u32 %s296, 1
        %s2099 = scalar_lea.sflag [#allocation3], %s2098
        %s2100 = sand.u32 %s296, 1
        %s2101 = smul.addr %s2100, 8
        %s2102 = scalar_lea.vmem [#allocation2], %s2101
        %s2103 = sand.u32 %s322, 1
        %s2104 = scalar_lea.sflag [#allocation5], %s2103
        %s2105 = sand.u32 %s322, 1
        %s2106 = smul.addr %s2105, 8
        %s2107 = scalar_lea.vmem [#allocation4], %s2106
        // Predicated region
        $region69: #{tpu_custom_call.1} parent=67 // pred_check
          %p2108 = pneg %p306
        $region70: #{tpu_custom_call.1} parent=67 // pred_check_branch
          %2110 = sbr.rel (%p2108) target = $region72
        $region71: #{tpu_custom_call.1} parent=67 // pred_region
          %s2112 = ssub.s32 128, 128
          %2113 = vsyncadd %s2099, %s2112
          %s2114 = smul.addr %s31, 128
          %s2115 = scalar_lea.hbm %s12, %s2114
          %s2117 = sshll.u32 %s2102, 4
          %s2118 = int_to_ptr.vmem [resolvable:$true] %s2117
          %2120 = dma.vmem_to_hbm [thread:$0]  %s2118, 128, %s2115, %s2099
        $region72: #{tpu_custom_call.1} parent=67 // pred_fallthru
          _
        // Predicated region
        $region73: #{tpu_custom_call.1} parent=67 // pred_check
          %p2121 = pneg %p332
        $region74: #{tpu_custom_call.1} parent=67 // pred_check_branch
          %2123 = sbr.rel (%p2121) target = $region76
        $region75: #{tpu_custom_call.1} parent=67 // pred_region
          %s2125 = ssub.s32 128, 128
          %2126 = vsyncadd %s2104, %s2125
          %s2127 = smul.addr %s31, 128
          %s2128 = scalar_lea.hbm %s13, %s2127
          %s2130 = sshll.u32 %s2107, 4
          %s2131 = int_to_ptr.vmem [resolvable:$true] %s2130
          %2133 = dma.vmem_to_hbm [thread:$0]  %s2131, 128, %s2128, %s2104
        $region76: #{tpu_custom_call.1} parent=67 // pred_fallthru
          _
      $region68: #{tpu_custom_call.1} parent=5 // pred_fallthru
        _
      %p2134 = scmp.le.s32.totalorder 2, %s26
      // Predicated region
      $region77: #{tpu_custom_call.1} parent=5 // pred_check
        %p2135 = pneg %p2134
      $region78: #{tpu_custom_call.1} parent=5 // pred_check_branch
        %2137 = sbr.rel (%p2135) target = $region80
      $region79: #{tpu_custom_call.1} parent=5 // pred_region
        %s2138 = ssub.s32 %s26, 2
        // Predicated region
        $region81: #{tpu_custom_call.1} parent=79 // pred_check
          %p2139 = pneg %p312
        $region82: #{tpu_custom_call.1} parent=79 // pred_check_branch
          %2141 = sbr.rel (%p2139) target = $region84
        $region83: #{tpu_custom_call.1} parent=79 // pred_region
          %s2142 = sand.u32 %s297, 1
          %s2143 = scalar_lea.sflag [#allocation3], %s2142
          %s2144 = sand.u32 %s297, 1
          %s2145 = smul.addr %s2144, 8
          %s2146 = scalar_lea.vmem [#allocation2], %s2145
          %2147 = dma.done %s2143, 128
        $region84: #{tpu_custom_call.1} parent=79 // pred_fallthru
          _
        // Predicated region
        $region85: #{tpu_custom_call.1} parent=79 // pred_check
          %p2148 = pneg %p338
        $region86: #{tpu_custom_call.1} parent=79 // pred_check_branch
          %2150 = sbr.rel (%p2148) target = $region88
        $region87: #{tpu_custom_call.1} parent=79 // pred_region
          %s2151 = sand.u32 %s323, 1
          %s2152 = scalar_lea.sflag [#allocation5], %s2151
          %s2153 = sand.u32 %s323, 1
          %s2154 = smul.addr %s2153, 8
          %s2155 = scalar_lea.vmem [#allocation4], %s2154
          %2156 = dma.done %s2152, 128
        $region88: #{tpu_custom_call.1} parent=79 // pred_fallthru
          _
      $region80: #{tpu_custom_call.1} parent=5 // pred_fallthru
        _
    $region6: #{tpu_custom_call.1} parent=1 // loop_footer
      %s30 = sadd.s32 1, %s26
    $region7: #{tpu_custom_call.1} parent=1 // loop_footer_branch
      %25 = sbr.rel target = $region3
    $region8: #{tpu_custom_call.1} parent=1 // loop_exit
      _
    %2157 = vsyncpa [#allocation3], 1
    %s2158 = scalar_lea.sflag [#allocation3], 1
    %2159 = vsyncpa %s2158, 1
    %2160 = vsyncpa [#allocation5], 1
    %s2161 = scalar_lea.sflag [#allocation5], 1
    %2162 = vsyncpa %s2161, 1

</llo_original>
